<compile_context>
chip_gen: v7x
topology: tpu7x:2x2x1
jax: 0.10.0
libtpu: 0.0.40
codegen_flags: <defaults>
</compile_context>

<pallas_src>
import numpy as np
import jax
import jax.numpy as jnp
from jax import lax
from jax.experimental import pallas as pl
from jax.experimental.pallas import tpu as pltpu


def rnn_kernel(x2d_ref,                         # (T*B, E) time-major, flattened
               wih_f_ref, whh_f_ref, b_f_ref,   # (E,4H) (H,4H) (1,4H)
               wih_b_ref, b_b_ref,              # (E,4H) (1,4H)
               wfc_ref, bfc_ref,                # (2H, OP) (1, OP)  OP = pad(O,128)
               sm_ref, lsm_ref):                # (B, OP) (B, OP)
    TB = x2d_ref.shape[0]
    H = whh_f_ref.shape[0]
    B = sm_ref.shape[0]
    T = TB // B

    x2d = x2d_ref[...]                          # (T*B, E)

    # --- Hoisted input projection: one (T*B,E)@(E,4H) matmul + one bias add ---
    xp_f = (jnp.dot(x2d, wih_f_ref[...], preferred_element_type=jnp.float32)
            + b_f_ref[...])                     # (T*B, 4H)

    # Gate nonlinearity on the full (B, 4H) vreg: sigmoid everywhere, tanh on
    # the g block selected by a lane mask (avoids 4 partial-lane activation ops).
    lane = lax.broadcasted_iota(jnp.int32, (B, 4 * H), 1)
    g_mask = (lane >= 2 * H) & (lane < 3 * H)

    def gate_act(gates):
        return jnp.where(g_mask, jnp.tanh(gates), jax.nn.sigmoid(gates))

    def combine(act, c):
        i = act[:, 0 * H:1 * H]
        f = act[:, 1 * H:2 * H]
        g = act[:, 2 * H:3 * H]
        o = act[:, 3 * H:4 * H]
        c_new = f * c + i * g
        h_new = o * jnp.tanh(c_new)
        return h_new, c_new

    # --- Backward direction (out[:, -1, H:]): single step of x[T-1] from a zero
    # state; independent of the forward chain, so computed up front. h=0 means
    # the h @ W_hh_b term vanishes, hence no W_hh_b input.
    x_last = x2d[(T - 1) * B:T * B, :]          # (B, E)
    gates_b = (jnp.dot(x_last, wih_b_ref[...], preferred_element_type=jnp.float32)
               + b_b_ref[...])
    hb, _ = combine(gate_act(gates_b), jnp.zeros((B, H), jnp.float32))

    # --- Forward recurrence: h/c live in vregs; only h @ W_hh per step ---
    whh = whh_f_ref[...]
    h = jnp.zeros((B, H), jnp.float32)
    c = jnp.zeros((B, H), jnp.float32)
    for t in range(T):                          # T is small & static: full unroll
        gates = xp_f[t * B:(t + 1) * B, :] + jnp.dot(
            h, whh, preferred_element_type=jnp.float32)
        h, c = combine(gate_act(gates), c)

    # --- Fused FC head + softmax / log_softmax over the (padded) class axis ---
    hcat = jnp.concatenate([h, hb], axis=1)     # (B, 2H)
    logits = (jnp.dot(hcat, wfc_ref[...], preferred_element_type=jnp.float32)
              + bfc_ref[...])                   # (B, OP); pad lanes ~ -1e30

    m = jnp.max(logits, axis=1, keepdims=True)
    e = jnp.exp(logits - m)                     # pad lanes underflow to 0
    s = jnp.sum(e, axis=1, keepdims=True)
    inv_s = pl.reciprocal(s, approx=True)
    sm_ref[...] = e * inv_s
    lsm_ref[...] = (logits - m) - jnp.log(s)


def make_params(key, x_dim, e_dim, h_dim, o_dim):
    ks = jax.random.split(key, 13)
    scale = 1.0 / np.sqrt(h_dim)

    emb = jax.random.normal(ks[0], (x_dim, e_dim), jnp.float32)
    emb = emb.at[0].set(0.0)  # padding_idx=0

    def u(k, shape):
        return jax.random.uniform(k, shape, jnp.float32, minval=-scale, maxval=scale)

    return dict(
        emb=emb,
        # forward direction (PyTorch gate order i, f, g, o along the 4H axis)
        wih_f=u(ks[1], (e_dim, 4 * h_dim)),
        whh_f=u(ks[2], (h_dim, 4 * h_dim)),
        b_f=u(ks[3], (1, 4 * h_dim)) + u(ks[4], (1, 4 * h_dim)),   # b_ih + b_hh
        # reverse direction (whh_b kept for the reference; unused by the kernel
        # because out[:, -1, H:] only sees one reverse step from a zero state)
        wih_b=u(ks[5], (e_dim, 4 * h_dim)),
        whh_b=u(ks[6], (h_dim, 4 * h_dim)),
        b_b=u(ks[7], (1, 4 * h_dim)) + u(ks[8], (1, 4 * h_dim)),
        # fc: Linear(2H, O) split into fwd/bwd halves, transposed
        wfc_f=u(ks[9], (h_dim, o_dim)),
        wfc_b=u(ks[10], (h_dim, o_dim)),
        bfc=u(ks[11], (1, o_dim)),
    )


def rnn_forward(x_tokens, lens, params, h_dim, o_dim):
    # lens is accepted but ignored — the reference forward() never uses it
    # (no pack_padded_sequence), it just runs the LSTM over the full sequence.
    del lens
    embed = jnp.take(params["emb"], x_tokens, axis=0)                # (B, T, E)
    # TODO(synk): nn.Dropout(0.2) is stochastic in train mode; inference-mode
    # identity is used here.
    B, T, E = embed.shape
    x2d = jnp.transpose(embed, (1, 0, 2)).reshape(T * B, E).astype(jnp.float32)

    # Lane-dense padded class axis for the output stores.
    OP = 128 * pl.cdiv(o_dim, 128)
    wfc = jnp.concatenate([params["wfc_f"], params["wfc_b"]], axis=0)  # (2H, O)
    wfc_pad = jnp.zeros((2 * h_dim, OP), jnp.float32).at[:, :o_dim].set(wfc)
    bfc_pad = jnp.full((1, OP), -1e30, jnp.float32).at[:, :o_dim].set(params["bfc"])

    vmem = pl.BlockSpec(memory_space=pltpu.MemorySpace.VMEM)
    sm_p, lsm_p = pl.pallas_call(
        rnn_kernel,
        out_shape=(jax.ShapeDtypeStruct((B, OP), jnp.float32),
                   jax.ShapeDtypeStruct((B, OP), jnp.float32)),
        in_specs=[vmem] * 8,
        out_specs=(vmem, vmem),
    )(x2d,
      params["wih_f"], params["whh_f"], params["b_f"],
      params["wih_b"], params["b_b"],
      wfc_pad, bfc_pad)
    return sm_p[:, :o_dim], lsm_p[:, :o_dim]


def reference_forward(x_tokens, params, h_dim, o_dim):
    """Pure-JAX reference with the same module semantics (inference mode)."""
    H = h_dim
    emb = jnp.take(params["emb"], x_tokens, axis=0)                  # (B, T, E)
    B, T, _ = emb.shape

    def cell(x, h, c, wih, whh, b):
        g = x @ wih + h @ whh + b
        i = jax.nn.sigmoid(g[:, 0 * H:1 * H])
        f = jax.nn.sigmoid(g[:, 1 * H:2 * H])
        gg = jnp.tanh(g[:, 2 * H:3 * H])
        o = jax.nn.sigmoid(g[:, 3 * H:4 * H])
        c2 = f * c + i * gg
        return o * jnp.tanh(c2), c2

    h = jnp.zeros((B, H), jnp.float32)
    c = jnp.zeros((B, H), jnp.float32)
    for t in range(T):
        h, c = cell(emb[:, t, :], h, c,
                    params["wih_f"], params["whh_f"], params["b_f"])
    # reverse-direction output at the last position = one step over x[:, -1]
    hb, _ = cell(emb[:, T - 1, :],
                 jnp.zeros((B, H), jnp.float32), jnp.zeros((B, H), jnp.float32),
                 params["wih_b"], params["whh_b"], params["b_b"])
    hcat = jnp.concatenate([h, hb], axis=1)
    wfc = jnp.concatenate([params["wfc_f"], params["wfc_b"]], axis=0)
    logits = hcat @ wfc + params["bfc"]
    return jax.nn.softmax(logits, axis=1), jax.nn.log_softmax(logits, axis=1)


if __name__ == "__main__":
    x_dim, e_dim, h_dim, o_dim = 50, 32, 32, 8
    B, T = 2, 8

    key = jax.random.PRNGKey(0)
    kp, kx = jax.random.split(key)
    params = make_params(kp, x_dim, e_dim, h_dim, o_dim)

    x = jax.random.randint(kx, (B, T), 0, x_dim, dtype=jnp.int32)
    lens = jnp.array([T, T - 2], dtype=jnp.int32)  # forward() ignores lens

    sm, lsm = rnn_forward(x, lens, params, h_dim, o_dim)
    jax.block_until_ready((sm, lsm))

    sm_ref, lsm_ref = reference_forward(x, params, h_dim, o_dim)

    assert sm.shape == (B, o_dim) and lsm.shape == (B, o_dim)
    assert bool(jnp.allclose(jnp.sum(sm, axis=1), 1.0, atol=2e-3))
    assert bool(jnp.allclose(jnp.exp(lsm), sm, atol=2e-3))
    assert bool(jnp.allclose(sm, sm_ref, atol=2e-3, rtol=2e-3))
    assert bool(jnp.allclose(lsm, lsm_ref, atol=2e-3, rtol=2e-3))
    print("KERNEL_OK")
</pallas_src>

<mosaic_0001>
module attributes {stable_mosaic.version = 11 : i64} {
  func.func @rnn_kernel(%arg0: memref<16x32xf32, #tpu.memory_space<vmem>>, %arg1: memref<32x128xf32, #tpu.memory_space<vmem>>, %arg2: memref<32x128xf32, #tpu.memory_space<vmem>>, %arg3: memref<1x128xf32, #tpu.memory_space<vmem>>, %arg4: memref<32x128xf32, #tpu.memory_space<vmem>>, %arg5: memref<1x128xf32, #tpu.memory_space<vmem>>, %arg6: memref<64x128xf32, #tpu.memory_space<vmem>>, %arg7: memref<1x128xf32, #tpu.memory_space<vmem>>, %arg8: memref<2x128xf32, #tpu.memory_space<vmem>>, %arg9: memref<2x128xf32, #tpu.memory_space<vmem>>) attributes {dimension_semantics = [], scalar_prefetch = 0 : i64, scratch_operands = 0 : i64, tpu.core_type = #tpu.core_type<tc>} {
    %c0 = arith.constant 0 : index
    %c0_0 = arith.constant 0 : index
    %0 = vector.load %arg0[%c0, %c0_0] : memref<16x32xf32, #tpu.memory_space<vmem>>, vector<16x32xf32>
    %c0_1 = arith.constant 0 : index
    %c0_2 = arith.constant 0 : index
    %1 = vector.load %arg1[%c0_1, %c0_2] : memref<32x128xf32, #tpu.memory_space<vmem>>, vector<32x128xf32>
    %cst = arith.constant dense<0.000000e+00> : vector<16x128xf32>
    %2 = tpu.matmul %0, %1, %cst {dimension_numbers = #tpu.dot_dimension_numbers<[1], [0], [0], [1], [0, 0, 1, 1], [], []>} : vector<16x32xf32>, vector<32x128xf32>, vector<16x128xf32> -> vector<16x128xf32>
    %c0_3 = arith.constant 0 : index
    %c0_4 = arith.constant 0 : index
    %3 = vector.load %arg3[%c0_3, %c0_4] : memref<1x128xf32, #tpu.memory_space<vmem>>, vector<1x128xf32>
    %4 = vector.broadcast %3 : vector<1x128xf32> to vector<16x128xf32>
    %5 = arith.addf %2, %4 : vector<16x128xf32>
    %6 = tpu.iota {dimensions = array<i32: 1>} : vector<2x128xi32>
    %c64_i32 = arith.constant 64 : i32
    %7 = vector.broadcast %c64_i32 : i32 to vector<2x128xi32>
    %8 = arith.cmpi sge, %6, %7 : vector<2x128xi32>
    %c96_i32 = arith.constant 96 : i32
    %9 = vector.broadcast %c96_i32 : i32 to vector<2x128xi32>
    %10 = arith.cmpi slt, %6, %9 : vector<2x128xi32>
    %11 = arith.andi %8, %10 : vector<2x128xi1>
    %12 = vector.extract_strided_slice %0 {offsets = [14, 0], sizes = [2, 32], strides = [1, 1]} : vector<16x32xf32> to vector<2x32xf32>
    %c0_5 = arith.constant 0 : index
    %c0_6 = arith.constant 0 : index
    %13 = vector.load %arg4[%c0_5, %c0_6] : memref<32x128xf32, #tpu.memory_space<vmem>>, vector<32x128xf32>
    %cst_7 = arith.constant dense<0.000000e+00> : vector<2x128xf32>
    %14 = tpu.matmul %12, %13, %cst_7 {dimension_numbers = #tpu.dot_dimension_numbers<[1], [0], [0], [1], [0, 0, 1, 1], [], []>} : vector<2x32xf32>, vector<32x128xf32>, vector<2x128xf32> -> vector<2x128xf32>
    %c0_8 = arith.constant 0 : index
    %c0_9 = arith.constant 0 : index
    %15 = vector.load %arg5[%c0_8, %c0_9] : memref<1x128xf32, #tpu.memory_space<vmem>>, vector<1x128xf32>
    %16 = vector.broadcast %15 : vector<1x128xf32> to vector<2x128xf32>
    %17 = arith.addf %14, %16 : vector<2x128xf32>
    %18 = math.tanh %17 : vector<2x128xf32>
    %19 = arith.negf %17 : vector<2x128xf32>
    %20 = math.exp %19 : vector<2x128xf32>
    %cst_10 = arith.constant 1.000000e+00 : f32
    %21 = vector.broadcast %cst_10 : f32 to vector<2x128xf32>
    %22 = arith.addf %21, %20 : vector<2x128xf32>
    %23 = arith.divf %21, %22 : vector<2x128xf32>
    %24 = arith.select %11, %18, %23 : vector<2x128xi1>, vector<2x128xf32>
    %cst_11 = arith.constant 0.000000e+00 : f32
    %25 = vector.broadcast %cst_11 : f32 to vector<2x32xf32>
    %26 = vector.extract_strided_slice %24 {offsets = [0, 0], sizes = [2, 32], strides = [1, 1]} : vector<2x128xf32> to vector<2x32xf32>
    %27 = vector.extract_strided_slice %24 {offsets = [0, 32], sizes = [2, 32], strides = [1, 1]} : vector<2x128xf32> to vector<2x32xf32>
    %28 = vector.extract_strided_slice %24 {offsets = [0, 64], sizes = [2, 32], strides = [1, 1]} : vector<2x128xf32> to vector<2x32xf32>
    %29 = vector.extract_strided_slice %24 {offsets = [0, 96], sizes = [2, 32], strides = [1, 1]} : vector<2x128xf32> to vector<2x32xf32>
    %30 = arith.mulf %27, %25 : vector<2x32xf32>
    %31 = arith.mulf %26, %28 : vector<2x32xf32>
    %32 = arith.addf %30, %31 : vector<2x32xf32>
    %33 = math.tanh %32 : vector<2x32xf32>
    %34 = arith.mulf %29, %33 : vector<2x32xf32>
    %c0_12 = arith.constant 0 : index
    %c0_13 = arith.constant 0 : index
    %35 = vector.load %arg2[%c0_12, %c0_13] : memref<32x128xf32, #tpu.memory_space<vmem>>, vector<32x128xf32>
    %cst_14 = arith.constant 0.000000e+00 : f32
    %36 = vector.broadcast %cst_14 : f32 to vector<2x32xf32>
    %cst_15 = arith.constant 0.000000e+00 : f32
    %37 = vector.broadcast %cst_15 : f32 to vector<2x32xf32>
    %38 = vector.extract_strided_slice %5 {offsets = [0, 0], sizes = [2, 128], strides = [1, 1]} : vector<16x128xf32> to vector<2x128xf32>
    %cst_16 = arith.constant dense<0.000000e+00> : vector<2x128xf32>
    %39 = tpu.matmul %36, %35, %cst_16 {dimension_numbers = #tpu.dot_dimension_numbers<[1], [0], [0], [1], [0, 0, 1, 1], [], []>} : vector<2x32xf32>, vector<32x128xf32>, vector<2x128xf32> -> vector<2x128xf32>
    %40 = arith.addf %38, %39 : vector<2x128xf32>
    %41 = math.tanh %40 : vector<2x128xf32>
    %42 = arith.negf %40 : vector<2x128xf32>
    %43 = math.exp %42 : vector<2x128xf32>
    %cst_17 = arith.constant 1.000000e+00 : f32
    %44 = vector.broadcast %cst_17 : f32 to vector<2x128xf32>
    %45 = arith.addf %44, %43 : vector<2x128xf32>
    %46 = arith.divf %44, %45 : vector<2x128xf32>
    %47 = arith.select %11, %41, %46 : vector<2x128xi1>, vector<2x128xf32>
    %48 = vector.extract_strided_slice %47 {offsets = [0, 0], sizes = [2, 32], strides = [1, 1]} : vector<2x128xf32> to vector<2x32xf32>
    %49 = vector.extract_strided_slice %47 {offsets = [0, 32], sizes = [2, 32], strides = [1, 1]} : vector<2x128xf32> to vector<2x32xf32>
    %50 = vector.extract_strided_slice %47 {offsets = [0, 64], sizes = [2, 32], strides = [1, 1]} : vector<2x128xf32> to vector<2x32xf32>
    %51 = vector.extract_strided_slice %47 {offsets = [0, 96], sizes = [2, 32], strides = [1, 1]} : vector<2x128xf32> to vector<2x32xf32>
    %52 = arith.mulf %49, %37 : vector<2x32xf32>
    %53 = arith.mulf %48, %50 : vector<2x32xf32>
    %54 = arith.addf %52, %53 : vector<2x32xf32>
    %55 = math.tanh %54 : vector<2x32xf32>
    %56 = arith.mulf %51, %55 : vector<2x32xf32>
    %57 = vector.extract_strided_slice %5 {offsets = [2, 0], sizes = [2, 128], strides = [1, 1]} : vector<16x128xf32> to vector<2x128xf32>
    %cst_18 = arith.constant dense<0.000000e+00> : vector<2x128xf32>
    %58 = tpu.matmul %56, %35, %cst_18 {dimension_numbers = #tpu.dot_dimension_numbers<[1], [0], [0], [1], [0, 0, 1, 1], [], []>} : vector<2x32xf32>, vector<32x128xf32>, vector<2x128xf32> -> vector<2x128xf32>
    %59 = arith.addf %57, %58 : vector<2x128xf32>
    %60 = math.tanh %59 : vector<2x128xf32>
    %61 = arith.negf %59 : vector<2x128xf32>
    %62 = math.exp %61 : vector<2x128xf32>
    %cst_19 = arith.constant 1.000000e+00 : f32
    %63 = vector.broadcast %cst_19 : f32 to vector<2x128xf32>
    %64 = arith.addf %63, %62 : vector<2x128xf32>
    %65 = arith.divf %63, %64 : vector<2x128xf32>
    %66 = arith.select %11, %60, %65 : vector<2x128xi1>, vector<2x128xf32>
    %67 = vector.extract_strided_slice %66 {offsets = [0, 0], sizes = [2, 32], strides = [1, 1]} : vector<2x128xf32> to vector<2x32xf32>
    %68 = vector.extract_strided_slice %66 {offsets = [0, 32], sizes = [2, 32], strides = [1, 1]} : vector<2x128xf32> to vector<2x32xf32>
    %69 = vector.extract_strided_slice %66 {offsets = [0, 64], sizes = [2, 32], strides = [1, 1]} : vector<2x128xf32> to vector<2x32xf32>
    %70 = vector.extract_strided_slice %66 {offsets = [0, 96], sizes = [2, 32], strides = [1, 1]} : vector<2x128xf32> to vector<2x32xf32>
    %71 = arith.mulf %68, %54 : vector<2x32xf32>
    %72 = arith.mulf %67, %69 : vector<2x32xf32>
    %73 = arith.addf %71, %72 : vector<2x32xf32>
    %74 = math.tanh %73 : vector<2x32xf32>
    %75 = arith.mulf %70, %74 : vector<2x32xf32>
    %76 = vector.extract_strided_slice %5 {offsets = [4, 0], sizes = [2, 128], strides = [1, 1]} : vector<16x128xf32> to vector<2x128xf32>
    %cst_20 = arith.constant dense<0.000000e+00> : vector<2x128xf32>
    %77 = tpu.matmul %75, %35, %cst_20 {dimension_numbers = #tpu.dot_dimension_numbers<[1], [0], [0], [1], [0, 0, 1, 1], [], []>} : vector<2x32xf32>, vector<32x128xf32>, vector<2x128xf32> -> vector<2x128xf32>
    %78 = arith.addf %76, %77 : vector<2x128xf32>
    %79 = math.tanh %78 : vector<2x128xf32>
    %80 = arith.negf %78 : vector<2x128xf32>
    %81 = math.exp %80 : vector<2x128xf32>
    %cst_21 = arith.constant 1.000000e+00 : f32
    %82 = vector.broadcast %cst_21 : f32 to vector<2x128xf32>
    %83 = arith.addf %82, %81 : vector<2x128xf32>
    %84 = arith.divf %82, %83 : vector<2x128xf32>
    %85 = arith.select %11, %79, %84 : vector<2x128xi1>, vector<2x128xf32>
    %86 = vector.extract_strided_slice %85 {offsets = [0, 0], sizes = [2, 32], strides = [1, 1]} : vector<2x128xf32> to vector<2x32xf32>
    %87 = vector.extract_strided_slice %85 {offsets = [0, 32], sizes = [2, 32], strides = [1, 1]} : vector<2x128xf32> to vector<2x32xf32>
    %88 = vector.extract_strided_slice %85 {offsets = [0, 64], sizes = [2, 32], strides = [1, 1]} : vector<2x128xf32> to vector<2x32xf32>
    %89 = vector.extract_strided_slice %85 {offsets = [0, 96], sizes = [2, 32], strides = [1, 1]} : vector<2x128xf32> to vector<2x32xf32>
    %90 = arith.mulf %87, %73 : vector<2x32xf32>
    %91 = arith.mulf %86, %88 : vector<2x32xf32>
    %92 = arith.addf %90, %91 : vector<2x32xf32>
    %93 = math.tanh %92 : vector<2x32xf32>
    %94 = arith.mulf %89, %93 : vector<2x32xf32>
    %95 = vector.extract_strided_slice %5 {offsets = [6, 0], sizes = [2, 128], strides = [1, 1]} : vector<16x128xf32> to vector<2x128xf32>
    %cst_22 = arith.constant dense<0.000000e+00> : vector<2x128xf32>
    %96 = tpu.matmul %94, %35, %cst_22 {dimension_numbers = #tpu.dot_dimension_numbers<[1], [0], [0], [1], [0, 0, 1, 1], [], []>} : vector<2x32xf32>, vector<32x128xf32>, vector<2x128xf32> -> vector<2x128xf32>
    %97 = arith.addf %95, %96 : vector<2x128xf32>
    %98 = math.tanh %97 : vector<2x128xf32>
    %99 = arith.negf %97 : vector<2x128xf32>
    %100 = math.exp %99 : vector<2x128xf32>
    %cst_23 = arith.constant 1.000000e+00 : f32
    %101 = vector.broadcast %cst_23 : f32 to vector<2x128xf32>
    %102 = arith.addf %101, %100 : vector<2x128xf32>
    %103 = arith.divf %101, %102 : vector<2x128xf32>
    %104 = arith.select %11, %98, %103 : vector<2x128xi1>, vector<2x128xf32>
    %105 = vector.extract_strided_slice %104 {offsets = [0, 0], sizes = [2, 32], strides = [1, 1]} : vector<2x128xf32> to vector<2x32xf32>
    %106 = vector.extract_strided_slice %104 {offsets = [0, 32], sizes = [2, 32], strides = [1, 1]} : vector<2x128xf32> to vector<2x32xf32>
    %107 = vector.extract_strided_slice %104 {offsets = [0, 64], sizes = [2, 32], strides = [1, 1]} : vector<2x128xf32> to vector<2x32xf32>
    %108 = vector.extract_strided_slice %104 {offsets = [0, 96], sizes = [2, 32], strides = [1, 1]} : vector<2x128xf32> to vector<2x32xf32>
    %109 = arith.mulf %106, %92 : vector<2x32xf32>
    %110 = arith.mulf %105, %107 : vector<2x32xf32>
    %111 = arith.addf %109, %110 : vector<2x32xf32>
    %112 = math.tanh %111 : vector<2x32xf32>
    %113 = arith.mulf %108, %112 : vector<2x32xf32>
    %114 = vector.extract_strided_slice %5 {offsets = [8, 0], sizes = [2, 128], strides = [1, 1]} : vector<16x128xf32> to vector<2x128xf32>
    %cst_24 = arith.constant dense<0.000000e+00> : vector<2x128xf32>
    %115 = tpu.matmul %113, %35, %cst_24 {dimension_numbers = #tpu.dot_dimension_numbers<[1], [0], [0], [1], [0, 0, 1, 1], [], []>} : vector<2x32xf32>, vector<32x128xf32>, vector<2x128xf32> -> vector<2x128xf32>
    %116 = arith.addf %114, %115 : vector<2x128xf32>
    %117 = math.tanh %116 : vector<2x128xf32>
    %118 = arith.negf %116 : vector<2x128xf32>
    %119 = math.exp %118 : vector<2x128xf32>
    %cst_25 = arith.constant 1.000000e+00 : f32
    %120 = vector.broadcast %cst_25 : f32 to vector<2x128xf32>
    %121 = arith.addf %120, %119 : vector<2x128xf32>
    %122 = arith.divf %120, %121 : vector<2x128xf32>
    %123 = arith.select %11, %117, %122 : vector<2x128xi1>, vector<2x128xf32>
    %124 = vector.extract_strided_slice %123 {offsets = [0, 0], sizes = [2, 32], strides = [1, 1]} : vector<2x128xf32> to vector<2x32xf32>
    %125 = vector.extract_strided_slice %123 {offsets = [0, 32], sizes = [2, 32], strides = [1, 1]} : vector<2x128xf32> to vector<2x32xf32>
    %126 = vector.extract_strided_slice %123 {offsets = [0, 64], sizes = [2, 32], strides = [1, 1]} : vector<2x128xf32> to vector<2x32xf32>
    %127 = vector.extract_strided_slice %123 {offsets = [0, 96], sizes = [2, 32], strides = [1, 1]} : vector<2x128xf32> to vector<2x32xf32>
    %128 = arith.mulf %125, %111 : vector<2x32xf32>
    %129 = arith.mulf %124, %126 : vector<2x32xf32>
    %130 = arith.addf %128, %129 : vector<2x32xf32>
    %131 = math.tanh %130 : vector<2x32xf32>
    %132 = arith.mulf %127, %131 : vector<2x32xf32>
    %133 = vector.extract_strided_slice %5 {offsets = [10, 0], sizes = [2, 128], strides = [1, 1]} : vector<16x128xf32> to vector<2x128xf32>
    %cst_26 = arith.constant dense<0.000000e+00> : vector<2x128xf32>
    %134 = tpu.matmul %132, %35, %cst_26 {dimension_numbers = #tpu.dot_dimension_numbers<[1], [0], [0], [1], [0, 0, 1, 1], [], []>} : vector<2x32xf32>, vector<32x128xf32>, vector<2x128xf32> -> vector<2x128xf32>
    %135 = arith.addf %133, %134 : vector<2x128xf32>
    %136 = math.tanh %135 : vector<2x128xf32>
    %137 = arith.negf %135 : vector<2x128xf32>
    %138 = math.exp %137 : vector<2x128xf32>
    %cst_27 = arith.constant 1.000000e+00 : f32
    %139 = vector.broadcast %cst_27 : f32 to vector<2x128xf32>
    %140 = arith.addf %139, %138 : vector<2x128xf32>
    %141 = arith.divf %139, %140 : vector<2x128xf32>
    %142 = arith.select %11, %136, %141 : vector<2x128xi1>, vector<2x128xf32>
    %143 = vector.extract_strided_slice %142 {offsets = [0, 0], sizes = [2, 32], strides = [1, 1]} : vector<2x128xf32> to vector<2x32xf32>
    %144 = vector.extract_strided_slice %142 {offsets = [0, 32], sizes = [2, 32], strides = [1, 1]} : vector<2x128xf32> to vector<2x32xf32>
    %145 = vector.extract_strided_slice %142 {offsets = [0, 64], sizes = [2, 32], strides = [1, 1]} : vector<2x128xf32> to vector<2x32xf32>
    %146 = vector.extract_strided_slice %142 {offsets = [0, 96], sizes = [2, 32], strides = [1, 1]} : vector<2x128xf32> to vector<2x32xf32>
    %147 = arith.mulf %144, %130 : vector<2x32xf32>
    %148 = arith.mulf %143, %145 : vector<2x32xf32>
    %149 = arith.addf %147, %148 : vector<2x32xf32>
    %150 = math.tanh %149 : vector<2x32xf32>
    %151 = arith.mulf %146, %150 : vector<2x32xf32>
    %152 = vector.extract_strided_slice %5 {offsets = [12, 0], sizes = [2, 128], strides = [1, 1]} : vector<16x128xf32> to vector<2x128xf32>
    %cst_28 = arith.constant dense<0.000000e+00> : vector<2x128xf32>
    %153 = tpu.matmul %151, %35, %cst_28 {dimension_numbers = #tpu.dot_dimension_numbers<[1], [0], [0], [1], [0, 0, 1, 1], [], []>} : vector<2x32xf32>, vector<32x128xf32>, vector<2x128xf32> -> vector<2x128xf32>
    %154 = arith.addf %152, %153 : vector<2x128xf32>
    %155 = math.tanh %154 : vector<2x128xf32>
    %156 = arith.negf %154 : vector<2x128xf32>
    %157 = math.exp %156 : vector<2x128xf32>
    %cst_29 = arith.constant 1.000000e+00 : f32
    %158 = vector.broadcast %cst_29 : f32 to vector<2x128xf32>
    %159 = arith.addf %158, %157 : vector<2x128xf32>
    %160 = arith.divf %158, %159 : vector<2x128xf32>
    %161 = arith.select %11, %155, %160 : vector<2x128xi1>, vector<2x128xf32>
    %162 = vector.extract_strided_slice %161 {offsets = [0, 0], sizes = [2, 32], strides = [1, 1]} : vector<2x128xf32> to vector<2x32xf32>
    %163 = vector.extract_strided_slice %161 {offsets = [0, 32], sizes = [2, 32], strides = [1, 1]} : vector<2x128xf32> to vector<2x32xf32>
    %164 = vector.extract_strided_slice %161 {offsets = [0, 64], sizes = [2, 32], strides = [1, 1]} : vector<2x128xf32> to vector<2x32xf32>
    %165 = vector.extract_strided_slice %161 {offsets = [0, 96], sizes = [2, 32], strides = [1, 1]} : vector<2x128xf32> to vector<2x32xf32>
    %166 = arith.mulf %163, %149 : vector<2x32xf32>
    %167 = arith.mulf %162, %164 : vector<2x32xf32>
    %168 = arith.addf %166, %167 : vector<2x32xf32>
    %169 = math.tanh %168 : vector<2x32xf32>
    %170 = arith.mulf %165, %169 : vector<2x32xf32>
    %171 = vector.extract_strided_slice %5 {offsets = [14, 0], sizes = [2, 128], strides = [1, 1]} : vector<16x128xf32> to vector<2x128xf32>
    %cst_30 = arith.constant dense<0.000000e+00> : vector<2x128xf32>
    %172 = tpu.matmul %170, %35, %cst_30 {dimension_numbers = #tpu.dot_dimension_numbers<[1], [0], [0], [1], [0, 0, 1, 1], [], []>} : vector<2x32xf32>, vector<32x128xf32>, vector<2x128xf32> -> vector<2x128xf32>
    %173 = arith.addf %171, %172 : vector<2x128xf32>
    %174 = math.tanh %173 : vector<2x128xf32>
    %175 = arith.negf %173 : vector<2x128xf32>
    %176 = math.exp %175 : vector<2x128xf32>
    %cst_31 = arith.constant 1.000000e+00 : f32
    %177 = vector.broadcast %cst_31 : f32 to vector<2x128xf32>
    %178 = arith.addf %177, %176 : vector<2x128xf32>
    %179 = arith.divf %177, %178 : vector<2x128xf32>
    %180 = arith.select %11, %174, %179 : vector<2x128xi1>, vector<2x128xf32>
    %181 = vector.extract_strided_slice %180 {offsets = [0, 0], sizes = [2, 32], strides = [1, 1]} : vector<2x128xf32> to vector<2x32xf32>
    %182 = vector.extract_strided_slice %180 {offsets = [0, 32], sizes = [2, 32], strides = [1, 1]} : vector<2x128xf32> to vector<2x32xf32>
    %183 = vector.extract_strided_slice %180 {offsets = [0, 64], sizes = [2, 32], strides = [1, 1]} : vector<2x128xf32> to vector<2x32xf32>
    %184 = vector.extract_strided_slice %180 {offsets = [0, 96], sizes = [2, 32], strides = [1, 1]} : vector<2x128xf32> to vector<2x32xf32>
    %185 = arith.mulf %182, %168 : vector<2x32xf32>
    %186 = arith.mulf %181, %183 : vector<2x32xf32>
    %187 = arith.addf %185, %186 : vector<2x32xf32>
    %188 = math.tanh %187 : vector<2x32xf32>
    %189 = arith.mulf %184, %188 : vector<2x32xf32>
    %190 = tpu.concatenate %189, %34 in 1 : vector<2x32xf32>, vector<2x32xf32> -> vector<2x64xf32>
    %c0_32 = arith.constant 0 : index
    %c0_33 = arith.constant 0 : index
    %191 = vector.load %arg6[%c0_32, %c0_33] : memref<64x128xf32, #tpu.memory_space<vmem>>, vector<64x128xf32>
    %cst_34 = arith.constant dense<0.000000e+00> : vector<2x128xf32>
    %192 = tpu.matmul %190, %191, %cst_34 {dimension_numbers = #tpu.dot_dimension_numbers<[1], [0], [0], [1], [0, 0, 1, 1], [], []>} : vector<2x64xf32>, vector<64x128xf32>, vector<2x128xf32> -> vector<2x128xf32>
    %c0_35 = arith.constant 0 : index
    %c0_36 = arith.constant 0 : index
    %193 = vector.load %arg7[%c0_35, %c0_36] : memref<1x128xf32, #tpu.memory_space<vmem>>, vector<1x128xf32>
    %194 = vector.broadcast %193 : vector<1x128xf32> to vector<2x128xf32>
    %195 = arith.addf %192, %194 : vector<2x128xf32>
    %cst_37 = arith.constant dense<0xFF800000> : vector<2xf32>
    %196 = vector.multi_reduction <maximumf>, %195, %cst_37 [1] : vector<2x128xf32> to vector<2xf32>
    %197 = vector.shape_cast %196 : vector<2xf32> to vector<2x1xf32>
    %198 = vector.broadcast %197 : vector<2x1xf32> to vector<2x128xf32>
    %199 = arith.subf %195, %198 : vector<2x128xf32>
    %200 = math.exp %199 : vector<2x128xf32>
    %cst_38 = arith.constant dense<0.000000e+00> : vector<2xf32>
    %201 = vector.multi_reduction <add>, %200, %cst_38 [1] : vector<2x128xf32> to vector<2xf32>
    %202 = vector.shape_cast %201 : vector<2xf32> to vector<2x1xf32>
    %203 = tpu.reciprocal %202 {approx = true} : vector<2x1xf32> -> vector<2x1xf32>
    %204 = vector.broadcast %203 : vector<2x1xf32> to vector<2x128xf32>
    %205 = arith.mulf %200, %204 : vector<2x128xf32>
    %c0_39 = arith.constant 0 : index
    %c0_40 = arith.constant 0 : index
    %206 = vector.load %arg8[%c0_39, %c0_40] : memref<2x128xf32, #tpu.memory_space<vmem>>, vector<2x128xf32>
    tpu.vector_store %arg8[%c0_39, %c0_40], %205 {strides = array<i32>} : memref<2x128xf32, #tpu.memory_space<vmem>>, vector<2x128xf32>,
    %207 = vector.broadcast %197 : vector<2x1xf32> to vector<2x128xf32>
    %208 = arith.subf %195, %207 : vector<2x128xf32>
    %209 = math.log %202 : vector<2x1xf32>
    %210 = vector.broadcast %209 : vector<2x1xf32> to vector<2x128xf32>
    %211 = arith.subf %208, %210 : vector<2x128xf32>
    %c0_41 = arith.constant 0 : index
    %c0_42 = arith.constant 0 : index
    %212 = vector.load %arg9[%c0_41, %c0_42] : memref<2x128xf32, #tpu.memory_space<vmem>>, vector<2x128xf32>
    tpu.vector_store %arg9[%c0_41, %c0_42], %211 {strides = array<i32>} : memref<2x128xf32, #tpu.memory_space<vmem>>, vector<2x128xf32>,
    return
  }
}

</mosaic_0001>

<llo_original>
// kernel: tpu_custom_call.1
$region0: #{tpu_custom_call.1}
  #allocation0 [shape = 'u32[]', space=smem, size = 0x4, offset = 0x4, fixed_abs, tag = 'smem constant byte address 0x4 - core index']
  #allocation1 [shape = 'u32[144,128]{1,0:T(1,128)}', space=vmem, size = 0x12000, scoped, tag = 'internal scratch']
  %s0 = inlined_call_operand.hbm [shape: f32[16,32], index: 0, kind: input, shape index: {}]
  %s1 = inlined_call_operand.hbm [shape: f32[32,128], index: 1, kind: input, shape index: {}]
  %s2 = inlined_call_operand.hbm [shape: f32[32,128], index: 2, kind: input, shape index: {}]
  %s3 = inlined_call_operand.vmem [shape: f32[1,128], index: 3, kind: input, shape index: {}]
  %s4 = inlined_call_operand.hbm [shape: f32[32,128], index: 4, kind: input, shape index: {}]
  %s5 = inlined_call_operand.vmem [shape: f32[1,128], index: 5, kind: input, shape index: {}]
  %s6 = inlined_call_operand.hbm [shape: f32[64,128], index: 6, kind: input, shape index: {}]
  %s7 = inlined_call_operand.vmem [shape: f32[1,128], index: 7, kind: input, shape index: {}]
  %s8 = inlined_call_operand.hbm [shape: f32[2,128], index: 8, kind: output, shape index: {0}]
  %s9 = inlined_call_operand.hbm [shape: f32[2,128], index: 9, kind: output, shape index: {1}]
  %10 = xla_tuple %s8, %s9
  %s11 = sld [smem:[#allocation0]]
  $region70: #{tpu_custom_call.1} parent=0
    _
  %s13 = ssub.s32 1, %s11
  %s14 = scalar_select 0, %s13, %s11
  $region1: #{tpu_custom_call.1} parent=0
    #allocation2 [shape = 'u8[8192]{0}', space=vmem, size = 0x2000, scoped, tag = 'input window, operand 0, single buffered']
    #allocation3 [shape = 's32[1]{0}', space=sflag, size = 0x4, scoped, tag = 'scoped memory for tpu_custom_call.1']
    #allocation4 [shape = 's32[1]{0}', space=sflag, size = 0x4, scoped, tag = 'scoped memory for tpu_custom_call.1']
    #allocation5 [shape = 'u8[16384]{0}', space=vmem, size = 0x4000, scoped, tag = 'input window, operand 1, single buffered']
    #allocation6 [shape = 's32[1]{0}', space=sflag, size = 0x4, scoped, tag = 'scoped memory for tpu_custom_call.1']
    #allocation7 [shape = 'u8[16384]{0}', space=vmem, size = 0x4000, scoped, tag = 'input window, operand 2, single buffered']
    #allocation8 [shape = 'u8[16384]{0}', space=vmem, size = 0x4000, scoped, tag = 'input window, operand 4, single buffered']
    #allocation9 [shape = 's32[1]{0}', space=sflag, size = 0x4, scoped, tag = 'scoped memory for tpu_custom_call.1']
    #allocation10 [shape = 'u8[32768]{0}', space=vmem, size = 0x8000, scoped, tag = 'input window, operand 6, single buffered']
    #allocation11 [shape = 'u8[1024]{0}', space=vmem, size = 0x400, scoped, tag = 'output window, operand 0, single buffered']
    #allocation12 [shape = 'u8[1024]{0}', space=vmem, size = 0x400, scoped, tag = 'output window, operand 1, single buffered']
    #allocation13 [shape = 's32[1]{0}', space=sflag, size = 0x4, scoped, tag = 'scoped memory for tpu_custom_call.1']
    %15 = vsyncpa [#allocation3], 0
    %16 = vsyncpa [#allocation6], 0
    %17 = vsyncpa [#allocation9], 0
    %18 = vsyncpa [#allocation4], 0
    %19 = vsyncpa [#allocation13], 0
    // Predicated region
    $region2: #{tpu_custom_call.1} parent=1 // pred_check
      _
    $region3: #{tpu_custom_call.1} parent=1 // pred_check_branch
      %21 = sbr.rel (0) target = $region5
    $region4: #{tpu_custom_call.1} parent=1 // pred_region
      %s23 = ssub.s32 256, 256
      %24 = vsyncadd [#allocation3], %s23
      %s25 = sshll.u32 [#allocation2], 4
      %s26 = int_to_ptr.vmem [resolvable:$true] %s25
      %31 = dma.hbm_to_vmem [thread:$0]  %s0, 256, %s26, [#allocation3], 128, 128, 8
    $region5: #{tpu_custom_call.1} parent=1 // pred_fallthru
      _
    // Predicated region
    $region6: #{tpu_custom_call.1} parent=1 // pred_check
      _
    $region7: #{tpu_custom_call.1} parent=1 // pred_check_branch
      %33 = sbr.rel (0) target = $region9
    $region8: #{tpu_custom_call.1} parent=1 // pred_region
      %s35 = ssub.s32 512, 512
      %36 = vsyncadd [#allocation6], %s35
      %s37 = sshll.u32 [#allocation5], 4
      %s38 = int_to_ptr.vmem [resolvable:$true] %s37
      %43 = dma.hbm_to_vmem [thread:$0]  %s1, 512, %s38, [#allocation6], 128, 128, 8
    $region9: #{tpu_custom_call.1} parent=1 // pred_fallthru
      _
    // Predicated region
    $region10: #{tpu_custom_call.1} parent=1 // pred_check
      _
    $region11: #{tpu_custom_call.1} parent=1 // pred_check_branch
      %45 = sbr.rel (0) target = $region13
    $region12: #{tpu_custom_call.1} parent=1 // pred_region
      %s47 = ssub.s32 512, 512
      %48 = vsyncadd [#allocation6], %s47
      %s49 = sshll.u32 [#allocation7], 4
      %s50 = int_to_ptr.vmem [resolvable:$true] %s49
      %55 = dma.hbm_to_vmem [thread:$0]  %s2, 512, %s50, [#allocation6], 128, 128, 8
    $region13: #{tpu_custom_call.1} parent=1 // pred_fallthru
      _
    // Predicated region
    $region14: #{tpu_custom_call.1} parent=1 // pred_check
      _
    $region15: #{tpu_custom_call.1} parent=1 // pred_check_branch
      %57 = sbr.rel (0) target = $region17
    $region16: #{tpu_custom_call.1} parent=1 // pred_region
      _
    $region17: #{tpu_custom_call.1} parent=1 // pred_fallthru
      _
    // Predicated region
    $region18: #{tpu_custom_call.1} parent=1 // pred_check
      _
    $region19: #{tpu_custom_call.1} parent=1 // pred_check_branch
      %59 = sbr.rel (0) target = $region21
    $region20: #{tpu_custom_call.1} parent=1 // pred_region
      %s61 = ssub.s32 512, 512
      %62 = vsyncadd [#allocation9], %s61
      %s63 = sshll.u32 [#allocation8], 4
      %s64 = int_to_ptr.vmem [resolvable:$true] %s63
      %69 = dma.hbm_to_vmem [thread:$0]  %s4, 512, %s64, [#allocation9], 128, 128, 8
    $region21: #{tpu_custom_call.1} parent=1 // pred_fallthru
      _
    // Predicated region
    $region22: #{tpu_custom_call.1} parent=1 // pred_check
      _
    $region23: #{tpu_custom_call.1} parent=1 // pred_check_branch
      %71 = sbr.rel (0) target = $region25
    $region24: #{tpu_custom_call.1} parent=1 // pred_region
      _
    $region25: #{tpu_custom_call.1} parent=1 // pred_fallthru
      _
    // Predicated region
    $region26: #{tpu_custom_call.1} parent=1 // pred_check
      _
    $region27: #{tpu_custom_call.1} parent=1 // pred_check_branch
      %73 = sbr.rel (0) target = $region29
    $region28: #{tpu_custom_call.1} parent=1 // pred_region
      %s75 = ssub.s32 1024, 1024
      %76 = vsyncadd [#allocation9], %s75
      %s77 = sshll.u32 [#allocation10], 4
      %s78 = int_to_ptr.vmem [resolvable:$true] %s77
      %83 = dma.hbm_to_vmem [thread:$0]  %s6, 1024, %s78, [#allocation9], 128, 128, 8
    $region29: #{tpu_custom_call.1} parent=1 // pred_fallthru
      _
    // Predicated region
    $region30: #{tpu_custom_call.1} parent=1 // pred_check
      _
    $region31: #{tpu_custom_call.1} parent=1 // pred_check_branch
      %85 = sbr.rel (0) target = $region33
    $region32: #{tpu_custom_call.1} parent=1 // pred_region
      _
    $region33: #{tpu_custom_call.1} parent=1 // pred_fallthru
      _
    // Predicated region
    $region34: #{tpu_custom_call.1} parent=1 // pred_check
      _
    $region35: #{tpu_custom_call.1} parent=1 // pred_check_branch
      %87 = sbr.rel (0) target = $region37
    $region36: #{tpu_custom_call.1} parent=1 // pred_region
      %88 = dma.done [#allocation3], 256
    $region37: #{tpu_custom_call.1} parent=1 // pred_fallthru
      _
    // Predicated region
    $region38: #{tpu_custom_call.1} parent=1 // pred_check
      _
    $region39: #{tpu_custom_call.1} parent=1 // pred_check_branch
      %90 = sbr.rel (0) target = $region41
    $region40: #{tpu_custom_call.1} parent=1 // pred_region
      %91 = dma.done [#allocation6], 512
    $region41: #{tpu_custom_call.1} parent=1 // pred_fallthru
      _
    // Predicated region
    $region42: #{tpu_custom_call.1} parent=1 // pred_check
      _
    $region43: #{tpu_custom_call.1} parent=1 // pred_check_branch
      %93 = sbr.rel (0) target = $region45
    $region44: #{tpu_custom_call.1} parent=1 // pred_region
      %94 = dma.done [#allocation6], 512
    $region45: #{tpu_custom_call.1} parent=1 // pred_fallthru
      _
    // Predicated region
    $region46: #{tpu_custom_call.1} parent=1 // pred_check
      _
    $region47: #{tpu_custom_call.1} parent=1 // pred_check_branch
      %96 = sbr.rel (0) target = $region49
    $region48: #{tpu_custom_call.1} parent=1 // pred_region
      %97 = dma.done [#allocation9], 512
    $region49: #{tpu_custom_call.1} parent=1 // pred_fallthru
      _
    // Predicated region
    $region50: #{tpu_custom_call.1} parent=1 // pred_check
      _
    $region51: #{tpu_custom_call.1} parent=1 // pred_check_branch
      %99 = sbr.rel (0) target = $region53
    $region52: #{tpu_custom_call.1} parent=1 // pred_region
      %100 = dma.done [#allocation9], 1024
    $region53: #{tpu_custom_call.1} parent=1 // pred_fallthru
      _
    %v101 = vld [vmem:[#allocation2] sm:$0xff]
    %v102 = vld [vmem:[#allocation2 + $0x8] sm:$0xff]
    %v103 = vld [vmem:[#allocation5] sm:$0xff]
    %v104 = vld [vmem:[#allocation5 + $0x8] sm:$0xff]
    %v105 = vld [vmem:[#allocation5 + $0x10] sm:$0xff]
    %v106 = vld [vmem:[#allocation5 + $0x18] sm:$0xff]
    %v107 = vld [vmem:[%s3] sm:$0x1]
    %v109 = vlaneseq
    %v110 = vshrl.u32 %v109, 7
    %v111 = vsub.s32 0, %v110
    %v112 = vrot.slane %v107, %v111
    %vm114 = vcmask 261120
    %v116 = vsel %vm114, %v101, 0
    %v119 = vsel %vm114, %v102, 0
    %121 = vmatprep.subr.mxu0 0.0
    %122 = vmatpush1.msra.mxu0 %v103
    %123 = vmatprep.subr.mxu0 0.0
    %124 = vmatpush1.msra.mxu0 %v104
    %125 = vmatprep.subr.mxu0 0.0
    %126 = vmatpush1.msra.mxu0 %v105
    %127 = vmatprep.subr.mxu0 0.0
    %128 = vmatpush1.msra.mxu0 %v106
    %129 = vmatprep.subr.mxu0 0.0
    %130 = vmatpush1.msra.mxu0 0.0
    %131 = vmatprep.subr.mxu0 0.0
    %132 = vmatpush1.msra.mxu0 0.0
    %133 = vmatprep.subr.mxu0 0.0
    %134 = vmatpush1.msra.mxu0 0.0
    %135 = vmatprep.subr.mxu0 0.0
    %136 = vmatpush1.msra.mxu0 0.0
    %137 = vmatprep.subr.mxu0 0.0
    %138 = vmatpush1.msra.mxu0 0.0
    %139 = vmatprep.subr.mxu0 0.0
    %140 = vmatpush1.msra.mxu0 0.0
    %141 = vmatprep.subr.mxu0 0.0
    %142 = vmatpush1.msra.mxu0 0.0
    %143 = vmatprep.subr.mxu0 0.0
    %144 = vmatpush1.msra.mxu0 0.0
    %145 = vmatprep.subr.mxu0 0.0
    %146 = vmatpush1.msra.mxu0 0.0
    %147 = vmatprep.subr.mxu0 0.0
    %148 = vmatpush1.msra.mxu0 0.0
    %149 = vmatprep.subr.mxu0 0.0
    %150 = vmatpush1.msra.mxu0 0.0
    %151 = vmatprep.subr.mxu0 0.0
    %152 = vmatpush1.msra.mxu0 0.0
    %153 = vmatprep.subr.mxu0 0.0
    %154 = vmatpush1.msra.mxu0 0.0
    %155 = vmatprep.subr.mxu0 0.0
    %156 = vmatpush1.msra.mxu0 0.0
    %157 = vmatprep.subr.mxu0 0.0
    %158 = vmatpush1.msra.mxu0 0.0
    %159 = vmatprep.subr.mxu0 0.0
    %160 = vmatpush1.msra.mxu0 0.0
    %161 = vmatprep.subr.mxu0 0.0
    %162 = vmatpush1.msra.mxu0 0.0
    %163 = vmatprep.subr.mxu0 0.0
    %164 = vmatpush1.msra.mxu0 0.0
    %165 = vmatprep.subr.mxu0 0.0
    %166 = vmatpush1.msra.mxu0 0.0
    %167 = vmatprep.subr.mxu0 0.0
    %168 = vmatpush1.msra.mxu0 0.0
    %169 = vmatprep.subr.mxu0 0.0
    %170 = vmatpush1.msra.mxu0 0.0
    %171 = vmatprep.subr.mxu0 0.0
    %172 = vmatpush1.msra.mxu0 0.0
    %173 = vmatprep.subr.mxu0 0.0
    %174 = vmatpush1.msra.mxu0 0.0
    %175 = vmatprep.subr.mxu0 0.0
    %176 = vmatpush1.msra.mxu0 0.0
    %177 = vmatprep.subr.mxu0 0.0
    %178 = vmatpush1.msra.mxu0 0.0
    %179 = vmatprep.subr.mxu0 0.0
    %180 = vmatpush1.msra.mxu0 0.0
    %181 = vmatprep.subr.mxu0 0.0
    %182 = vmatpush1.msra.mxu0 0.0
    %183 = vmatprep.subr.mxu0 0.0
    %184 = vmatpush1.msra.mxu0 0.0
    %185 = vmatprep.mubr.f32.mxu0 0.0
    %186 = vmatmul.mubr.f32.gmra.mrb[0].mxu0 %v116
    %v187 = vpop.f32.mrb[0].mxu0
    %v188 = vadd.f32 %v112, %v187
    %v189 = vpop.f32.mrb[0].mxu0
    %190 = vmatprep.mubr.f32.mxu0 0.0
    %191 = vmatmul.mubr.f32.gmra.mrb[0].mxu0 %v119
    %v192 = vpop.f32.mrb[0].mxu0
    %v193 = vadd.f32 %v112, %v192
    %v194 = vpop.f32.mrb[0].mxu0
    %195 = vdwg.mxu0
    %v196 = vlaneseq
    %v197 = vand.u32 %v196, 127
    %vm198 = vcmp.ge.s32.totalorder %v197, 64
    %vm199 = vcmp.lt.s32.totalorder %v197, 96
    %vm200 = vmand %vm198, %vm199
    %v201 = vld [vmem:[#allocation8] sm:$0xff]
    %v202 = vld [vmem:[#allocation8 + $0x8] sm:$0xff]
    %v203 = vld [vmem:[#allocation8 + $0x10] sm:$0xff]
    %v204 = vld [vmem:[#allocation8 + $0x18] sm:$0xff]
    %v205 = vld [vmem:[%s5] sm:$0x1]
    %v207 = vlaneseq
    %v208 = vshrl.u32 %v207, 7
    %v209 = vsub.s32 0, %v208
    %v210 = vrot.slane %v205, %v209
    %v212 = vrot.slane %v102, 6
    %v213 = vsel %vm114, %v212, 0
    %215 = vmatprep.subr.mxu0 0.0
    %216 = vmatpush1.msra.mxu0 %v201
    %217 = vmatprep.subr.mxu0 0.0
    %218 = vmatpush1.msra.mxu0 %v202
    %219 = vmatprep.subr.mxu0 0.0
    %220 = vmatpush1.msra.mxu0 %v203
    %221 = vmatprep.subr.mxu0 0.0
    %222 = vmatpush1.msra.mxu0 %v204
    %223 = vmatprep.subr.mxu0 0.0
    %224 = vmatpush1.msra.mxu0 0.0
    %225 = vmatprep.subr.mxu0 0.0
    %226 = vmatpush1.msra.mxu0 0.0
    %227 = vmatprep.subr.mxu0 0.0
    %228 = vmatpush1.msra.mxu0 0.0
    %229 = vmatprep.subr.mxu0 0.0
    %230 = vmatpush1.msra.mxu0 0.0
    %231 = vmatprep.subr.mxu0 0.0
    %232 = vmatpush1.msra.mxu0 0.0
    %233 = vmatprep.subr.mxu0 0.0
    %234 = vmatpush1.msra.mxu0 0.0
    %235 = vmatprep.subr.mxu0 0.0
    %236 = vmatpush1.msra.mxu0 0.0
    %237 = vmatprep.subr.mxu0 0.0
    %238 = vmatpush1.msra.mxu0 0.0
    %239 = vmatprep.subr.mxu0 0.0
    %240 = vmatpush1.msra.mxu0 0.0
    %241 = vmatprep.subr.mxu0 0.0
    %242 = vmatpush1.msra.mxu0 0.0
    %243 = vmatprep.subr.mxu0 0.0
    %244 = vmatpush1.msra.mxu0 0.0
    %245 = vmatprep.subr.mxu0 0.0
    %246 = vmatpush1.msra.mxu0 0.0
    %247 = vmatprep.subr.mxu0 0.0
    %248 = vmatpush1.msra.mxu0 0.0
    %249 = vmatprep.subr.mxu0 0.0
    %250 = vmatpush1.msra.mxu0 0.0
    %251 = vmatprep.subr.mxu0 0.0
    %252 = vmatpush1.msra.mxu0 0.0
    %253 = vmatprep.subr.mxu0 0.0
    %254 = vmatpush1.msra.mxu0 0.0
    %255 = vmatprep.subr.mxu0 0.0
    %256 = vmatpush1.msra.mxu0 0.0
    %257 = vmatprep.subr.mxu0 0.0
    %258 = vmatpush1.msra.mxu0 0.0
    %259 = vmatprep.subr.mxu0 0.0
    %260 = vmatpush1.msra.mxu0 0.0
    %261 = vmatprep.subr.mxu0 0.0
    %262 = vmatpush1.msra.mxu0 0.0
    %263 = vmatprep.subr.mxu0 0.0
    %264 = vmatpush1.msra.mxu0 0.0
    %265 = vmatprep.subr.mxu0 0.0
    %266 = vmatpush1.msra.mxu0 0.0
    %267 = vmatprep.subr.mxu0 0.0
    %268 = vmatpush1.msra.mxu0 0.0
    %269 = vmatprep.subr.mxu0 0.0
    %270 = vmatpush1.msra.mxu0 0.0
    %271 = vmatprep.subr.mxu0 0.0
    %272 = vmatpush1.msra.mxu0 0.0
    %273 = vmatprep.subr.mxu0 0.0
    %274 = vmatpush1.msra.mxu0 0.0
    %275 = vmatprep.subr.mxu0 0.0
    %276 = vmatpush1.msra.mxu0 0.0
    %277 = vmatprep.subr.mxu0 0.0
    %278 = vmatpush1.msra.mxu0 0.0
    %279 = vmatprep.mubr.f32.mxu0 0.0
    %280 = vmatmul.mubr.f32.gmra.mrb[0].mxu0 %v213
    %v281 = vpop.f32.mrb[0].mxu0
    %v282 = vadd.f32 %v210, %v281
    %v283 = vpop.f32.mrb[0].mxu0
    %284 = vdwg.mxu0
    %v285 = vtanh.pop %v282
    %v286 = vxor.u32 %v282, 2147483648
    %v287 = vmul.f32 %v286, 1.442695
    %v288 = vpow.pop %v287
    %v289 = vadd.f32 %v288, 1.0
    %v290 = vrcp.pop %v289
    %v291 = vmul.f32 1.0, %v290
    %v292 = vsel %vm200, %v285, %v291
    %v293 = vmul.f32 %v292, 0.0
    %295 = vrot.lane.b32.xlu0 %v292, 64
    %v296 = vpop.permute.xlu0 %295
    %v298 = vmul.f32 %v292, %v296
    %300 = vrot.lane.b32.xlu0 %v298, 32
    %v301 = vpop.permute.xlu0 %300
    %v303 = vadd.f32 %v293, %v301
    %v304 = vtanh.pop %v303
    %306 = vrot.lane.b32.xlu0 %v304, 64
    %v307 = vpop.permute.xlu0 %306
    %v309 = vmul.f32 %v292, %v307
    %v310 = vld [vmem:[#allocation7] sm:$0xff]
    %v311 = vld [vmem:[#allocation7 + $0x8] sm:$0xff]
    %v312 = vld [vmem:[#allocation7 + $0x10] sm:$0xff]
    %v313 = vld [vmem:[#allocation7 + $0x18] sm:$0xff]
    %v315 = vsel %vm114, 0.0, 0
    %317 = vmatprep.subr.mxu0 0.0
    %318 = vmatpush1.msra.mxu0 %v310
    %319 = vmatprep.subr.mxu0 0.0
    %320 = vmatpush1.msra.mxu0 %v311
    %321 = vmatprep.subr.mxu0 0.0
    %322 = vmatpush1.msra.mxu0 %v312
    %323 = vmatprep.subr.mxu0 0.0
    %324 = vmatpush1.msra.mxu0 %v313
    %325 = vmatprep.subr.mxu0 0.0
    %326 = vmatpush1.msra.mxu0 0.0
    %327 = vmatprep.subr.mxu0 0.0
    %328 = vmatpush1.msra.mxu0 0.0
    %329 = vmatprep.subr.mxu0 0.0
    %330 = vmatpush1.msra.mxu0 0.0
    %331 = vmatprep.subr.mxu0 0.0
    %332 = vmatpush1.msra.mxu0 0.0
    %333 = vmatprep.subr.mxu0 0.0
    %334 = vmatpush1.msra.mxu0 0.0
    %335 = vmatprep.subr.mxu0 0.0
    %336 = vmatpush1.msra.mxu0 0.0
    %337 = vmatprep.subr.mxu0 0.0
    %338 = vmatpush1.msra.mxu0 0.0
    %339 = vmatprep.subr.mxu0 0.0
    %340 = vmatpush1.msra.mxu0 0.0
    %341 = vmatprep.subr.mxu0 0.0
    %342 = vmatpush1.msra.mxu0 0.0
    %343 = vmatprep.subr.mxu0 0.0
    %344 = vmatpush1.msra.mxu0 0.0
    %345 = vmatprep.subr.mxu0 0.0
    %346 = vmatpush1.msra.mxu0 0.0
    %347 = vmatprep.subr.mxu0 0.0
    %348 = vmatpush1.msra.mxu0 0.0
    %349 = vmatprep.subr.mxu0 0.0
    %350 = vmatpush1.msra.mxu0 0.0
    %351 = vmatprep.subr.mxu0 0.0
    %352 = vmatpush1.msra.mxu0 0.0
    %353 = vmatprep.subr.mxu0 0.0
    %354 = vmatpush1.msra.mxu0 0.0
    %355 = vmatprep.subr.mxu0 0.0
    %356 = vmatpush1.msra.mxu0 0.0
    %357 = vmatprep.subr.mxu0 0.0
    %358 = vmatpush1.msra.mxu0 0.0
    %359 = vmatprep.subr.mxu0 0.0
    %360 = vmatpush1.msra.mxu0 0.0
    %361 = vmatprep.subr.mxu0 0.0
    %362 = vmatpush1.msra.mxu0 0.0
    %363 = vmatprep.subr.mxu0 0.0
    %364 = vmatpush1.msra.mxu0 0.0
    %365 = vmatprep.subr.mxu0 0.0
    %366 = vmatpush1.msra.mxu0 0.0
    %367 = vmatprep.subr.mxu0 0.0
    %368 = vmatpush1.msra.mxu0 0.0
    %369 = vmatprep.subr.mxu0 0.0
    %370 = vmatpush1.msra.mxu0 0.0
    %371 = vmatprep.subr.mxu0 0.0
    %372 = vmatpush1.msra.mxu0 0.0
    %373 = vmatprep.subr.mxu0 0.0
    %374 = vmatpush1.msra.mxu0 0.0
    %375 = vmatprep.subr.mxu0 0.0
    %376 = vmatpush1.msra.mxu0 0.0
    %377 = vmatprep.subr.mxu0 0.0
    %378 = vmatpush1.msra.mxu0 0.0
    %379 = vmatprep.subr.mxu0 0.0
    %380 = vmatpush1.msra.mxu0 0.0
    %381 = vmatprep.mubr.f32.mxu0 0.0
    %382 = vmatmul.mubr.f32.gmra.mrb[0].mxu0 %v315
    %v383 = vpop.f32.mrb[0].mxu0
    %v384 = vadd.f32 0.0, %v383
    %v385 = vpop.f32.mrb[0].mxu0
    %386 = vdwg.mxu0
    %v387 = vadd.f32 %v188, %v384
    %v388 = vtanh.pop %v387
    %v389 = vxor.u32 %v387, 2147483648
    %v390 = vmul.f32 %v389, 1.442695
    %v391 = vpow.pop %v390
    %v392 = vadd.f32 %v391, 1.0
    %v393 = vrcp.pop %v392
    %v394 = vmul.f32 1.0, %v393
    %v395 = vsel %vm200, %v388, %v394
    %v396 = vmul.f32 %v395, 0.0
    %398 = vrot.lane.b32.xlu0 %v395, 64
    %v399 = vpop.permute.xlu0 %398
    %v401 = vmul.f32 %v395, %v399
    %403 = vrot.lane.b32.xlu0 %v401, 32
    %v404 = vpop.permute.xlu0 %403
    %v406 = vadd.f32 %v396, %v404
    %v407 = vtanh.pop %v406
    %409 = vrot.lane.b32.xlu0 %v407, 64
    %v410 = vpop.permute.xlu0 %409
    %v412 = vmul.f32 %v395, %v410
    %414 = vrot.lane.b32.xlu0 %v412, 32
    %v415 = vpop.permute.xlu0 %414
    %v416 = vsel %vm114, %v415, 0
    %418 = vmatprep.subr.mxu0 0.0
    %419 = vmatpush1.msra.mxu0 %v310
    %420 = vmatprep.subr.mxu0 0.0
    %421 = vmatpush1.msra.mxu0 %v311
    %422 = vmatprep.subr.mxu0 0.0
    %423 = vmatpush1.msra.mxu0 %v312
    %424 = vmatprep.subr.mxu0 0.0
    %425 = vmatpush1.msra.mxu0 %v313
    %426 = vmatprep.subr.mxu0 0.0
    %427 = vmatpush1.msra.mxu0 0.0
    %428 = vmatprep.subr.mxu0 0.0
    %429 = vmatpush1.msra.mxu0 0.0
    %430 = vmatprep.subr.mxu0 0.0
    %431 = vmatpush1.msra.mxu0 0.0
    %432 = vmatprep.subr.mxu0 0.0
    %433 = vmatpush1.msra.mxu0 0.0
    %434 = vmatprep.subr.mxu0 0.0
    %435 = vmatpush1.msra.mxu0 0.0
    %436 = vmatprep.subr.mxu0 0.0
    %437 = vmatpush1.msra.mxu0 0.0
    %438 = vmatprep.subr.mxu0 0.0
    %439 = vmatpush1.msra.mxu0 0.0
    %440 = vmatprep.subr.mxu0 0.0
    %441 = vmatpush1.msra.mxu0 0.0
    %442 = vmatprep.subr.mxu0 0.0
    %443 = vmatpush1.msra.mxu0 0.0
    %444 = vmatprep.subr.mxu0 0.0
    %445 = vmatpush1.msra.mxu0 0.0
    %446 = vmatprep.subr.mxu0 0.0
    %447 = vmatpush1.msra.mxu0 0.0
    %448 = vmatprep.subr.mxu0 0.0
    %449 = vmatpush1.msra.mxu0 0.0
    %450 = vmatprep.subr.mxu0 0.0
    %451 = vmatpush1.msra.mxu0 0.0
    %452 = vmatprep.subr.mxu0 0.0
    %453 = vmatpush1.msra.mxu0 0.0
    %454 = vmatprep.subr.mxu0 0.0
    %455 = vmatpush1.msra.mxu0 0.0
    %456 = vmatprep.subr.mxu0 0.0
    %457 = vmatpush1.msra.mxu0 0.0
    %458 = vmatprep.subr.mxu0 0.0
    %459 = vmatpush1.msra.mxu0 0.0
    %460 = vmatprep.subr.mxu0 0.0
    %461 = vmatpush1.msra.mxu0 0.0
    %462 = vmatprep.subr.mxu0 0.0
    %463 = vmatpush1.msra.mxu0 0.0
    %464 = vmatprep.subr.mxu0 0.0
    %465 = vmatpush1.msra.mxu0 0.0
    %466 = vmatprep.subr.mxu0 0.0
    %467 = vmatpush1.msra.mxu0 0.0
    %468 = vmatprep.subr.mxu0 0.0
    %469 = vmatpush1.msra.mxu0 0.0
    %470 = vmatprep.subr.mxu0 0.0
    %471 = vmatpush1.msra.mxu0 0.0
    %472 = vmatprep.subr.mxu0 0.0
    %473 = vmatpush1.msra.mxu0 0.0
    %474 = vmatprep.subr.mxu0 0.0
    %475 = vmatpush1.msra.mxu0 0.0
    %476 = vmatprep.subr.mxu0 0.0
    %477 = vmatpush1.msra.mxu0 0.0
    %478 = vmatprep.subr.mxu0 0.0
    %479 = vmatpush1.msra.mxu0 0.0
    %480 = vmatprep.subr.mxu0 0.0
    %481 = vmatpush1.msra.mxu0 0.0
    %482 = vmatprep.mubr.f32.mxu0 0.0
    %483 = vmatmul.mubr.f32.gmra.mrb[0].mxu0 %v416
    %v484 = vpop.f32.mrb[0].mxu0
    %v485 = vadd.f32 0.0, %v484
    %v486 = vpop.f32.mrb[0].mxu0
    %487 = vdwg.mxu0
    %v489 = vrot.slane %v485, 6
    %v491 = vadd.f32 %v188, %v489
    %v492 = vtanh.pop %v491
    %v493 = vxor.u32 %v491, 2147483648
    %v494 = vmul.f32 %v493, 1.442695
    %v495 = vpow.pop %v494
    %v496 = vadd.f32 %v495, 1.0
    %v497 = vrcp.pop %v496
    %v498 = vmul.f32 1.0, %v497
    %v499 = vsel %vm200, %v492, %v498
    %v501 = vrot.slane %v406, 6
    %v503 = vmul.f32 %v499, %v501
    %505 = vrot.lane.b32.xlu0 %v499, 64
    %v506 = vpop.permute.xlu0 %505
    %v508 = vmul.f32 %v499, %v506
    %510 = vrot.lane.b32.xlu0 %v508, 32
    %v511 = vpop.permute.xlu0 %510
    %v513 = vadd.f32 %v503, %v511
    %v514 = vtanh.pop %v513
    %516 = vrot.lane.b32.xlu0 %v514, 64
    %v517 = vpop.permute.xlu0 %516
    %v519 = vmul.f32 %v499, %v517
    %v521 = vrot.slane %v519, 2
    %522 = vrot.lane.b32.xlu0 %v521, 32
    %v523 = vpop.permute.xlu0 %522
    %v524 = vsel %vm114, %v523, 0
    %526 = vmatprep.subr.mxu0 0.0
    %527 = vmatpush1.msra.mxu0 %v310
    %528 = vmatprep.subr.mxu0 0.0
    %529 = vmatpush1.msra.mxu0 %v311
    %530 = vmatprep.subr.mxu0 0.0
    %531 = vmatpush1.msra.mxu0 %v312
    %532 = vmatprep.subr.mxu0 0.0
    %533 = vmatpush1.msra.mxu0 %v313
    %534 = vmatprep.subr.mxu0 0.0
    %535 = vmatpush1.msra.mxu0 0.0
    %536 = vmatprep.subr.mxu0 0.0
    %537 = vmatpush1.msra.mxu0 0.0
    %538 = vmatprep.subr.mxu0 0.0
    %539 = vmatpush1.msra.mxu0 0.0
    %540 = vmatprep.subr.mxu0 0.0
    %541 = vmatpush1.msra.mxu0 0.0
    %542 = vmatprep.subr.mxu0 0.0
    %543 = vmatpush1.msra.mxu0 0.0
    %544 = vmatprep.subr.mxu0 0.0
    %545 = vmatpush1.msra.mxu0 0.0
    %546 = vmatprep.subr.mxu0 0.0
    %547 = vmatpush1.msra.mxu0 0.0
    %548 = vmatprep.subr.mxu0 0.0
    %549 = vmatpush1.msra.mxu0 0.0
    %550 = vmatprep.subr.mxu0 0.0
    %551 = vmatpush1.msra.mxu0 0.0
    %552 = vmatprep.subr.mxu0 0.0
    %553 = vmatpush1.msra.mxu0 0.0
    %554 = vmatprep.subr.mxu0 0.0
    %555 = vmatpush1.msra.mxu0 0.0
    %556 = vmatprep.subr.mxu0 0.0
    %557 = vmatpush1.msra.mxu0 0.0
    %558 = vmatprep.subr.mxu0 0.0
    %559 = vmatpush1.msra.mxu0 0.0
    %560 = vmatprep.subr.mxu0 0.0
    %561 = vmatpush1.msra.mxu0 0.0
    %562 = vmatprep.subr.mxu0 0.0
    %563 = vmatpush1.msra.mxu0 0.0
    %564 = vmatprep.subr.mxu0 0.0
    %565 = vmatpush1.msra.mxu0 0.0
    %566 = vmatprep.subr.mxu0 0.0
    %567 = vmatpush1.msra.mxu0 0.0
    %568 = vmatprep.subr.mxu0 0.0
    %569 = vmatpush1.msra.mxu0 0.0
    %570 = vmatprep.subr.mxu0 0.0
    %571 = vmatpush1.msra.mxu0 0.0
    %572 = vmatprep.subr.mxu0 0.0
    %573 = vmatpush1.msra.mxu0 0.0
    %574 = vmatprep.subr.mxu0 0.0
    %575 = vmatpush1.msra.mxu0 0.0
    %576 = vmatprep.subr.mxu0 0.0
    %577 = vmatpush1.msra.mxu0 0.0
    %578 = vmatprep.subr.mxu0 0.0
    %579 = vmatpush1.msra.mxu0 0.0
    %580 = vmatprep.subr.mxu0 0.0
    %581 = vmatpush1.msra.mxu0 0.0
    %582 = vmatprep.subr.mxu0 0.0
    %583 = vmatpush1.msra.mxu0 0.0
    %584 = vmatprep.subr.mxu0 0.0
    %585 = vmatpush1.msra.mxu0 0.0
    %586 = vmatprep.subr.mxu0 0.0
    %587 = vmatpush1.msra.mxu0 0.0
    %588 = vmatprep.subr.mxu0 0.0
    %589 = vmatpush1.msra.mxu0 0.0
    %590 = vmatprep.mubr.f32.mxu0 0.0
    %591 = vmatmul.mubr.f32.gmra.mrb[0].mxu0 %v524
    %v592 = vpop.f32.mrb[0].mxu0
    %v593 = vadd.f32 0.0, %v592
    %v594 = vpop.f32.mrb[0].mxu0
    %595 = vdwg.mxu0
    %v597 = vrot.slane %v593, 4
    %v599 = vadd.f32 %v188, %v597
    %v600 = vtanh.pop %v599
    %v601 = vxor.u32 %v599, 2147483648
    %v602 = vmul.f32 %v601, 1.442695
    %v603 = vpow.pop %v602
    %v604 = vadd.f32 %v603, 1.0
    %v605 = vrcp.pop %v604
    %v606 = vmul.f32 1.0, %v605
    %v607 = vsel %vm200, %v600, %v606
    %v609 = vrot.slane %v513, 6
    %v611 = vmul.f32 %v607, %v609
    %613 = vrot.lane.b32.xlu0 %v607, 64
    %v614 = vpop.permute.xlu0 %613
    %v616 = vmul.f32 %v607, %v614
    %618 = vrot.lane.b32.xlu0 %v616, 32
    %v619 = vpop.permute.xlu0 %618
    %v621 = vadd.f32 %v611, %v619
    %v622 = vtanh.pop %v621
    %624 = vrot.lane.b32.xlu0 %v622, 64
    %v625 = vpop.permute.xlu0 %624
    %v627 = vmul.f32 %v607, %v625
    %v629 = vrot.slane %v627, 4
    %630 = vrot.lane.b32.xlu0 %v629, 32
    %v631 = vpop.permute.xlu0 %630
    %v632 = vsel %vm114, %v631, 0
    %634 = vmatprep.subr.mxu0 0.0
    %635 = vmatpush1.msra.mxu0 %v310
    %636 = vmatprep.subr.mxu0 0.0
    %637 = vmatpush1.msra.mxu0 %v311
    %638 = vmatprep.subr.mxu0 0.0
    %639 = vmatpush1.msra.mxu0 %v312
    %640 = vmatprep.subr.mxu0 0.0
    %641 = vmatpush1.msra.mxu0 %v313
    %642 = vmatprep.subr.mxu0 0.0
    %643 = vmatpush1.msra.mxu0 0.0
    %644 = vmatprep.subr.mxu0 0.0
    %645 = vmatpush1.msra.mxu0 0.0
    %646 = vmatprep.subr.mxu0 0.0
    %647 = vmatpush1.msra.mxu0 0.0
    %648 = vmatprep.subr.mxu0 0.0
    %649 = vmatpush1.msra.mxu0 0.0
    %650 = vmatprep.subr.mxu0 0.0
    %651 = vmatpush1.msra.mxu0 0.0
    %652 = vmatprep.subr.mxu0 0.0
    %653 = vmatpush1.msra.mxu0 0.0
    %654 = vmatprep.subr.mxu0 0.0
    %655 = vmatpush1.msra.mxu0 0.0
    %656 = vmatprep.subr.mxu0 0.0
    %657 = vmatpush1.msra.mxu0 0.0
    %658 = vmatprep.subr.mxu0 0.0
    %659 = vmatpush1.msra.mxu0 0.0
    %660 = vmatprep.subr.mxu0 0.0
    %661 = vmatpush1.msra.mxu0 0.0
    %662 = vmatprep.subr.mxu0 0.0
    %663 = vmatpush1.msra.mxu0 0.0
    %664 = vmatprep.subr.mxu0 0.0
    %665 = vmatpush1.msra.mxu0 0.0
    %666 = vmatprep.subr.mxu0 0.0
    %667 = vmatpush1.msra.mxu0 0.0
    %668 = vmatprep.subr.mxu0 0.0
    %669 = vmatpush1.msra.mxu0 0.0
    %670 = vmatprep.subr.mxu0 0.0
    %671 = vmatpush1.msra.mxu0 0.0
    %672 = vmatprep.subr.mxu0 0.0
    %673 = vmatpush1.msra.mxu0 0.0
    %674 = vmatprep.subr.mxu0 0.0
    %675 = vmatpush1.msra.mxu0 0.0
    %676 = vmatprep.subr.mxu0 0.0
    %677 = vmatpush1.msra.mxu0 0.0
    %678 = vmatprep.subr.mxu0 0.0
    %679 = vmatpush1.msra.mxu0 0.0
    %680 = vmatprep.subr.mxu0 0.0
    %681 = vmatpush1.msra.mxu0 0.0
    %682 = vmatprep.subr.mxu0 0.0
    %683 = vmatpush1.msra.mxu0 0.0
    %684 = vmatprep.subr.mxu0 0.0
    %685 = vmatpush1.msra.mxu0 0.0
    %686 = vmatprep.subr.mxu0 0.0
    %687 = vmatpush1.msra.mxu0 0.0
    %688 = vmatprep.subr.mxu0 0.0
    %689 = vmatpush1.msra.mxu0 0.0
    %690 = vmatprep.subr.mxu0 0.0
    %691 = vmatpush1.msra.mxu0 0.0
    %692 = vmatprep.subr.mxu0 0.0
    %693 = vmatpush1.msra.mxu0 0.0
    %694 = vmatprep.subr.mxu0 0.0
    %695 = vmatpush1.msra.mxu0 0.0
    %696 = vmatprep.subr.mxu0 0.0
    %697 = vmatpush1.msra.mxu0 0.0
    %698 = vmatprep.mubr.f32.mxu0 0.0
    %699 = vmatmul.mubr.f32.gmra.mrb[0].mxu0 %v632
    %v700 = vpop.f32.mrb[0].mxu0
    %v701 = vadd.f32 0.0, %v700
    %v702 = vpop.f32.mrb[0].mxu0
    %703 = vdwg.mxu0
    %v705 = vrot.slane %v701, 2
    %v707 = vadd.f32 %v188, %v705
    %v708 = vtanh.pop %v707
    %v709 = vxor.u32 %v707, 2147483648
    %v710 = vmul.f32 %v709, 1.442695
    %v711 = vpow.pop %v710
    %v712 = vadd.f32 %v711, 1.0
    %v713 = vrcp.pop %v712
    %v714 = vmul.f32 1.0, %v713
    %v715 = vsel %vm200, %v708, %v714
    %v717 = vrot.slane %v621, 6
    %v719 = vmul.f32 %v715, %v717
    %721 = vrot.lane.b32.xlu0 %v715, 64
    %v722 = vpop.permute.xlu0 %721
    %v724 = vmul.f32 %v715, %v722
    %726 = vrot.lane.b32.xlu0 %v724, 32
    %v727 = vpop.permute.xlu0 %726
    %v729 = vadd.f32 %v719, %v727
    %v730 = vtanh.pop %v729
    %732 = vrot.lane.b32.xlu0 %v730, 64
    %v733 = vpop.permute.xlu0 %732
    %v735 = vmul.f32 %v715, %v733
    %v737 = vrot.slane %v735, 6
    %738 = vrot.lane.b32.xlu0 %v737, 32
    %v739 = vpop.permute.xlu0 %738
    %v740 = vsel %vm114, %v739, 0
    %742 = vmatprep.subr.mxu0 0.0
    %743 = vmatpush1.msra.mxu0 %v310
    %744 = vmatprep.subr.mxu0 0.0
    %745 = vmatpush1.msra.mxu0 %v311
    %746 = vmatprep.subr.mxu0 0.0
    %747 = vmatpush1.msra.mxu0 %v312
    %748 = vmatprep.subr.mxu0 0.0
    %749 = vmatpush1.msra.mxu0 %v313
    %750 = vmatprep.subr.mxu0 0.0
    %751 = vmatpush1.msra.mxu0 0.0
    %752 = vmatprep.subr.mxu0 0.0
    %753 = vmatpush1.msra.mxu0 0.0
    %754 = vmatprep.subr.mxu0 0.0
    %755 = vmatpush1.msra.mxu0 0.0
    %756 = vmatprep.subr.mxu0 0.0
    %757 = vmatpush1.msra.mxu0 0.0
    %758 = vmatprep.subr.mxu0 0.0
    %759 = vmatpush1.msra.mxu0 0.0
    %760 = vmatprep.subr.mxu0 0.0
    %761 = vmatpush1.msra.mxu0 0.0
    %762 = vmatprep.subr.mxu0 0.0
    %763 = vmatpush1.msra.mxu0 0.0
    %764 = vmatprep.subr.mxu0 0.0
    %765 = vmatpush1.msra.mxu0 0.0
    %766 = vmatprep.subr.mxu0 0.0
    %767 = vmatpush1.msra.mxu0 0.0
    %768 = vmatprep.subr.mxu0 0.0
    %769 = vmatpush1.msra.mxu0 0.0
    %770 = vmatprep.subr.mxu0 0.0
    %771 = vmatpush1.msra.mxu0 0.0
    %772 = vmatprep.subr.mxu0 0.0
    %773 = vmatpush1.msra.mxu0 0.0
    %774 = vmatprep.subr.mxu0 0.0
    %775 = vmatpush1.msra.mxu0 0.0
    %776 = vmatprep.subr.mxu0 0.0
    %777 = vmatpush1.msra.mxu0 0.0
    %778 = vmatprep.subr.mxu0 0.0
    %779 = vmatpush1.msra.mxu0 0.0
    %780 = vmatprep.subr.mxu0 0.0
    %781 = vmatpush1.msra.mxu0 0.0
    %782 = vmatprep.subr.mxu0 0.0
    %783 = vmatpush1.msra.mxu0 0.0
    %784 = vmatprep.subr.mxu0 0.0
    %785 = vmatpush1.msra.mxu0 0.0
    %786 = vmatprep.subr.mxu0 0.0
    %787 = vmatpush1.msra.mxu0 0.0
    %788 = vmatprep.subr.mxu0 0.0
    %789 = vmatpush1.msra.mxu0 0.0
    %790 = vmatprep.subr.mxu0 0.0
    %791 = vmatpush1.msra.mxu0 0.0
    %792 = vmatprep.subr.mxu0 0.0
    %793 = vmatpush1.msra.mxu0 0.0
    %794 = vmatprep.subr.mxu0 0.0
    %795 = vmatpush1.msra.mxu0 0.0
    %796 = vmatprep.subr.mxu0 0.0
    %797 = vmatpush1.msra.mxu0 0.0
    %798 = vmatprep.subr.mxu0 0.0
    %799 = vmatpush1.msra.mxu0 0.0
    %800 = vmatprep.subr.mxu0 0.0
    %801 = vmatpush1.msra.mxu0 0.0
    %802 = vmatprep.subr.mxu0 0.0
    %803 = vmatpush1.msra.mxu0 0.0
    %804 = vmatprep.subr.mxu0 0.0
    %805 = vmatpush1.msra.mxu0 0.0
    %806 = vmatprep.mubr.f32.mxu0 0.0
    %807 = vmatmul.mubr.f32.gmra.mrb[0].mxu0 %v740
    %v808 = vpop.f32.mrb[0].mxu0
    %v809 = vadd.f32 0.0, %v808
    %v810 = vpop.f32.mrb[0].mxu0
    %811 = vdwg.mxu0
    %v812 = vadd.f32 %v193, %v809
    %v813 = vtanh.pop %v812
    %v814 = vxor.u32 %v812, 2147483648
    %v815 = vmul.f32 %v814, 1.442695
    %v816 = vpow.pop %v815
    %v817 = vadd.f32 %v816, 1.0
    %v818 = vrcp.pop %v817
    %v819 = vmul.f32 1.0, %v818
    %v820 = vsel %vm200, %v813, %v819
    %v822 = vrot.slane %v729, 6
    %v824 = vmul.f32 %v820, %v822
    %826 = vrot.lane.b32.xlu0 %v820, 64
    %v827 = vpop.permute.xlu0 %826
    %v829 = vmul.f32 %v820, %v827
    %831 = vrot.lane.b32.xlu0 %v829, 32
    %v832 = vpop.permute.xlu0 %831
    %v834 = vadd.f32 %v824, %v832
    %v835 = vtanh.pop %v834
    %837 = vrot.lane.b32.xlu0 %v835, 64
    %v838 = vpop.permute.xlu0 %837
    %v840 = vmul.f32 %v820, %v838
    %842 = vrot.lane.b32.xlu0 %v840, 32
    %v843 = vpop.permute.xlu0 %842
    %v844 = vsel %vm114, %v843, 0
    %846 = vmatprep.subr.mxu0 0.0
    %847 = vmatpush1.msra.mxu0 %v310
    %848 = vmatprep.subr.mxu0 0.0
    %849 = vmatpush1.msra.mxu0 %v311
    %850 = vmatprep.subr.mxu0 0.0
    %851 = vmatpush1.msra.mxu0 %v312
    %852 = vmatprep.subr.mxu0 0.0
    %853 = vmatpush1.msra.mxu0 %v313
    %854 = vmatprep.subr.mxu0 0.0
    %855 = vmatpush1.msra.mxu0 0.0
    %856 = vmatprep.subr.mxu0 0.0
    %857 = vmatpush1.msra.mxu0 0.0
    %858 = vmatprep.subr.mxu0 0.0
    %859 = vmatpush1.msra.mxu0 0.0
    %860 = vmatprep.subr.mxu0 0.0
    %861 = vmatpush1.msra.mxu0 0.0
    %862 = vmatprep.subr.mxu0 0.0
    %863 = vmatpush1.msra.mxu0 0.0
    %864 = vmatprep.subr.mxu0 0.0
    %865 = vmatpush1.msra.mxu0 0.0
    %866 = vmatprep.subr.mxu0 0.0
    %867 = vmatpush1.msra.mxu0 0.0
    %868 = vmatprep.subr.mxu0 0.0
    %869 = vmatpush1.msra.mxu0 0.0
    %870 = vmatprep.subr.mxu0 0.0
    %871 = vmatpush1.msra.mxu0 0.0
    %872 = vmatprep.subr.mxu0 0.0
    %873 = vmatpush1.msra.mxu0 0.0
    %874 = vmatprep.subr.mxu0 0.0
    %875 = vmatpush1.msra.mxu0 0.0
    %876 = vmatprep.subr.mxu0 0.0
    %877 = vmatpush1.msra.mxu0 0.0
    %878 = vmatprep.subr.mxu0 0.0
    %879 = vmatpush1.msra.mxu0 0.0
    %880 = vmatprep.subr.mxu0 0.0
    %881 = vmatpush1.msra.mxu0 0.0
    %882 = vmatprep.subr.mxu0 0.0
    %883 = vmatpush1.msra.mxu0 0.0
    %884 = vmatprep.subr.mxu0 0.0
    %885 = vmatpush1.msra.mxu0 0.0
    %886 = vmatprep.subr.mxu0 0.0
    %887 = vmatpush1.msra.mxu0 0.0
    %888 = vmatprep.subr.mxu0 0.0
    %889 = vmatpush1.msra.mxu0 0.0
    %890 = vmatprep.subr.mxu0 0.0
    %891 = vmatpush1.msra.mxu0 0.0
    %892 = vmatprep.subr.mxu0 0.0
    %893 = vmatpush1.msra.mxu0 0.0
    %894 = vmatprep.subr.mxu0 0.0
    %895 = vmatpush1.msra.mxu0 0.0
    %896 = vmatprep.subr.mxu0 0.0
    %897 = vmatpush1.msra.mxu0 0.0
    %898 = vmatprep.subr.mxu0 0.0
    %899 = vmatpush1.msra.mxu0 0.0
    %900 = vmatprep.subr.mxu0 0.0
    %901 = vmatpush1.msra.mxu0 0.0
    %902 = vmatprep.subr.mxu0 0.0
    %903 = vmatpush1.msra.mxu0 0.0
    %904 = vmatprep.subr.mxu0 0.0
    %905 = vmatpush1.msra.mxu0 0.0
    %906 = vmatprep.subr.mxu0 0.0
    %907 = vmatpush1.msra.mxu0 0.0
    %908 = vmatprep.subr.mxu0 0.0
    %909 = vmatpush1.msra.mxu0 0.0
    %910 = vmatprep.mubr.f32.mxu0 0.0
    %911 = vmatmul.mubr.f32.gmra.mrb[0].mxu0 %v844
    %v912 = vpop.f32.mrb[0].mxu0
    %v913 = vadd.f32 0.0, %v912
    %v914 = vpop.f32.mrb[0].mxu0
    %915 = vdwg.mxu0
    %v917 = vrot.slane %v913, 6
    %v919 = vadd.f32 %v193, %v917
    %v920 = vtanh.pop %v919
    %v921 = vxor.u32 %v919, 2147483648
    %v922 = vmul.f32 %v921, 1.442695
    %v923 = vpow.pop %v922
    %v924 = vadd.f32 %v923, 1.0
    %v925 = vrcp.pop %v924
    %v926 = vmul.f32 1.0, %v925
    %v927 = vsel %vm200, %v920, %v926
    %v929 = vrot.slane %v834, 6
    %v931 = vmul.f32 %v927, %v929
    %933 = vrot.lane.b32.xlu0 %v927, 64
    %v934 = vpop.permute.xlu0 %933
    %v936 = vmul.f32 %v927, %v934
    %938 = vrot.lane.b32.xlu0 %v936, 32
    %v939 = vpop.permute.xlu0 %938
    %v941 = vadd.f32 %v931, %v939
    %v942 = vtanh.pop %v941
    %944 = vrot.lane.b32.xlu0 %v942, 64
    %v945 = vpop.permute.xlu0 %944
    %v947 = vmul.f32 %v927, %v945
    %v949 = vrot.slane %v947, 2
    %950 = vrot.lane.b32.xlu0 %v949, 32
    %v951 = vpop.permute.xlu0 %950
    %v952 = vsel %vm114, %v951, 0
    %954 = vmatprep.subr.mxu0 0.0
    %955 = vmatpush1.msra.mxu0 %v310
    %956 = vmatprep.subr.mxu0 0.0
    %957 = vmatpush1.msra.mxu0 %v311
    %958 = vmatprep.subr.mxu0 0.0
    %959 = vmatpush1.msra.mxu0 %v312
    %960 = vmatprep.subr.mxu0 0.0
    %961 = vmatpush1.msra.mxu0 %v313
    %962 = vmatprep.subr.mxu0 0.0
    %963 = vmatpush1.msra.mxu0 0.0
    %964 = vmatprep.subr.mxu0 0.0
    %965 = vmatpush1.msra.mxu0 0.0
    %966 = vmatprep.subr.mxu0 0.0
    %967 = vmatpush1.msra.mxu0 0.0
    %968 = vmatprep.subr.mxu0 0.0
    %969 = vmatpush1.msra.mxu0 0.0
    %970 = vmatprep.subr.mxu0 0.0
    %971 = vmatpush1.msra.mxu0 0.0
    %972 = vmatprep.subr.mxu0 0.0
    %973 = vmatpush1.msra.mxu0 0.0
    %974 = vmatprep.subr.mxu0 0.0
    %975 = vmatpush1.msra.mxu0 0.0
    %976 = vmatprep.subr.mxu0 0.0
    %977 = vmatpush1.msra.mxu0 0.0
    %978 = vmatprep.subr.mxu0 0.0
    %979 = vmatpush1.msra.mxu0 0.0
    %980 = vmatprep.subr.mxu0 0.0
    %981 = vmatpush1.msra.mxu0 0.0
    %982 = vmatprep.subr.mxu0 0.0
    %983 = vmatpush1.msra.mxu0 0.0
    %984 = vmatprep.subr.mxu0 0.0
    %985 = vmatpush1.msra.mxu0 0.0
    %986 = vmatprep.subr.mxu0 0.0
    %987 = vmatpush1.msra.mxu0 0.0
    %988 = vmatprep.subr.mxu0 0.0
    %989 = vmatpush1.msra.mxu0 0.0
    %990 = vmatprep.subr.mxu0 0.0
    %991 = vmatpush1.msra.mxu0 0.0
    %992 = vmatprep.subr.mxu0 0.0
    %993 = vmatpush1.msra.mxu0 0.0
    %994 = vmatprep.subr.mxu0 0.0
    %995 = vmatpush1.msra.mxu0 0.0
    %996 = vmatprep.subr.mxu0 0.0
    %997 = vmatpush1.msra.mxu0 0.0
    %998 = vmatprep.subr.mxu0 0.0
    %999 = vmatpush1.msra.mxu0 0.0
    %1000 = vmatprep.subr.mxu0 0.0
    %1001 = vmatpush1.msra.mxu0 0.0
    %1002 = vmatprep.subr.mxu0 0.0
    %1003 = vmatpush1.msra.mxu0 0.0
    %1004 = vmatprep.subr.mxu0 0.0
    %1005 = vmatpush1.msra.mxu0 0.0
    %1006 = vmatprep.subr.mxu0 0.0
    %1007 = vmatpush1.msra.mxu0 0.0
    %1008 = vmatprep.subr.mxu0 0.0
    %1009 = vmatpush1.msra.mxu0 0.0
    %1010 = vmatprep.subr.mxu0 0.0
    %1011 = vmatpush1.msra.mxu0 0.0
    %1012 = vmatprep.subr.mxu0 0.0
    %1013 = vmatpush1.msra.mxu0 0.0
    %1014 = vmatprep.subr.mxu0 0.0
    %1015 = vmatpush1.msra.mxu0 0.0
    %1016 = vmatprep.subr.mxu0 0.0
    %1017 = vmatpush1.msra.mxu0 0.0
    %1018 = vmatprep.mubr.f32.mxu0 0.0
    %1019 = vmatmul.mubr.f32.gmra.mrb[0].mxu0 %v952
    %v1020 = vpop.f32.mrb[0].mxu0
    %v1021 = vadd.f32 0.0, %v1020
    %v1022 = vpop.f32.mrb[0].mxu0
    %1023 = vdwg.mxu0
    %v1025 = vrot.slane %v1021, 4
    %v1027 = vadd.f32 %v193, %v1025
    %v1028 = vtanh.pop %v1027
    %v1029 = vxor.u32 %v1027, 2147483648
    %v1030 = vmul.f32 %v1029, 1.442695
    %v1031 = vpow.pop %v1030
    %v1032 = vadd.f32 %v1031, 1.0
    %v1033 = vrcp.pop %v1032
    %v1034 = vmul.f32 1.0, %v1033
    %v1035 = vsel %vm200, %v1028, %v1034
    %v1037 = vrot.slane %v941, 6
    %v1039 = vmul.f32 %v1035, %v1037
    %1041 = vrot.lane.b32.xlu0 %v1035, 64
    %v1042 = vpop.permute.xlu0 %1041
    %v1044 = vmul.f32 %v1035, %v1042
    %1046 = vrot.lane.b32.xlu0 %v1044, 32
    %v1047 = vpop.permute.xlu0 %1046
    %v1049 = vadd.f32 %v1039, %v1047
    %v1050 = vtanh.pop %v1049
    %1052 = vrot.lane.b32.xlu0 %v1050, 64
    %v1053 = vpop.permute.xlu0 %1052
    %v1055 = vmul.f32 %v1035, %v1053
    %v1057 = vrot.slane %v1055, 4
    %1058 = vrot.lane.b32.xlu0 %v1057, 32
    %v1059 = vpop.permute.xlu0 %1058
    %v1060 = vsel %vm114, %v1059, 0
    %1062 = vmatprep.subr.mxu0 0.0
    %1063 = vmatpush1.msra.mxu0 %v310
    %1064 = vmatprep.subr.mxu0 0.0
    %1065 = vmatpush1.msra.mxu0 %v311
    %1066 = vmatprep.subr.mxu0 0.0
    %1067 = vmatpush1.msra.mxu0 %v312
    %1068 = vmatprep.subr.mxu0 0.0
    %1069 = vmatpush1.msra.mxu0 %v313
    %1070 = vmatprep.subr.mxu0 0.0
    %1071 = vmatpush1.msra.mxu0 0.0
    %1072 = vmatprep.subr.mxu0 0.0
    %1073 = vmatpush1.msra.mxu0 0.0
    %1074 = vmatprep.subr.mxu0 0.0
    %1075 = vmatpush1.msra.mxu0 0.0
    %1076 = vmatprep.subr.mxu0 0.0
    %1077 = vmatpush1.msra.mxu0 0.0
    %1078 = vmatprep.subr.mxu0 0.0
    %1079 = vmatpush1.msra.mxu0 0.0
    %1080 = vmatprep.subr.mxu0 0.0
    %1081 = vmatpush1.msra.mxu0 0.0
    %1082 = vmatprep.subr.mxu0 0.0
    %1083 = vmatpush1.msra.mxu0 0.0
    %1084 = vmatprep.subr.mxu0 0.0
    %1085 = vmatpush1.msra.mxu0 0.0
    %1086 = vmatprep.subr.mxu0 0.0
    %1087 = vmatpush1.msra.mxu0 0.0
    %1088 = vmatprep.subr.mxu0 0.0
    %1089 = vmatpush1.msra.mxu0 0.0
    %1090 = vmatprep.subr.mxu0 0.0
    %1091 = vmatpush1.msra.mxu0 0.0
    %1092 = vmatprep.subr.mxu0 0.0
    %1093 = vmatpush1.msra.mxu0 0.0
    %1094 = vmatprep.subr.mxu0 0.0
    %1095 = vmatpush1.msra.mxu0 0.0
    %1096 = vmatprep.subr.mxu0 0.0
    %1097 = vmatpush1.msra.mxu0 0.0
    %1098 = vmatprep.subr.mxu0 0.0
    %1099 = vmatpush1.msra.mxu0 0.0
    %1100 = vmatprep.subr.mxu0 0.0
    %1101 = vmatpush1.msra.mxu0 0.0
    %1102 = vmatprep.subr.mxu0 0.0
    %1103 = vmatpush1.msra.mxu0 0.0
    %1104 = vmatprep.subr.mxu0 0.0
    %1105 = vmatpush1.msra.mxu0 0.0
    %1106 = vmatprep.subr.mxu0 0.0
    %1107 = vmatpush1.msra.mxu0 0.0
    %1108 = vmatprep.subr.mxu0 0.0
    %1109 = vmatpush1.msra.mxu0 0.0
    %1110 = vmatprep.subr.mxu0 0.0
    %1111 = vmatpush1.msra.mxu0 0.0
    %1112 = vmatprep.subr.mxu0 0.0
    %1113 = vmatpush1.msra.mxu0 0.0
    %1114 = vmatprep.subr.mxu0 0.0
    %1115 = vmatpush1.msra.mxu0 0.0
    %1116 = vmatprep.subr.mxu0 0.0
    %1117 = vmatpush1.msra.mxu0 0.0
    %1118 = vmatprep.subr.mxu0 0.0
    %1119 = vmatpush1.msra.mxu0 0.0
    %1120 = vmatprep.subr.mxu0 0.0
    %1121 = vmatpush1.msra.mxu0 0.0
    %1122 = vmatprep.subr.mxu0 0.0
    %1123 = vmatpush1.msra.mxu0 0.0
    %1124 = vmatprep.subr.mxu0 0.0
    %1125 = vmatpush1.msra.mxu0 0.0
    %1126 = vmatprep.mubr.f32.mxu0 0.0
    %1127 = vmatmul.mubr.f32.gmra.mrb[0].mxu0 %v1060
    %v1128 = vpop.f32.mrb[0].mxu0
    %v1129 = vadd.f32 0.0, %v1128
    %v1130 = vpop.f32.mrb[0].mxu0
    %1131 = vdwg.mxu0
    %v1133 = vrot.slane %v1129, 2
    %v1135 = vadd.f32 %v193, %v1133
    %v1136 = vtanh.pop %v1135
    %v1137 = vxor.u32 %v1135, 2147483648
    %v1138 = vmul.f32 %v1137, 1.442695
    %v1139 = vpow.pop %v1138
    %v1140 = vadd.f32 %v1139, 1.0
    %v1141 = vrcp.pop %v1140
    %v1142 = vmul.f32 1.0, %v1141
    %v1143 = vsel %vm200, %v1136, %v1142
    %v1145 = vrot.slane %v1049, 6
    %v1147 = vmul.f32 %v1143, %v1145
    %1149 = vrot.lane.b32.xlu0 %v1143, 64
    %v1150 = vpop.permute.xlu0 %1149
    %v1152 = vmul.f32 %v1143, %v1150
    %1154 = vrot.lane.b32.xlu0 %v1152, 32
    %v1155 = vpop.permute.xlu0 %1154
    %v1157 = vadd.f32 %v1147, %v1155
    %v1158 = vtanh.pop %v1157
    %1160 = vrot.lane.b32.xlu0 %v1158, 64
    %v1161 = vpop.permute.xlu0 %1160
    %v1163 = vmul.f32 %v1143, %v1161
    %1165 = vrot.lane.b32.xlu0 %v1163, 32
    %v1166 = vpop.permute.xlu0 %1165
    %v1169 = vrot.slane %v309, 2
    %1170 = vrot.lane.b32.xlu0 %v1169, 64
    %v1171 = vpop.permute.xlu0 %1170
    %v1173 = vsel %vm114, %v1166, %v1171
    %v1174 = vld [vmem:[#allocation10] sm:$0xff]
    %v1175 = vld [vmem:[#allocation10 + $0x8] sm:$0xff]
    %v1176 = vld [vmem:[#allocation10 + $0x10] sm:$0xff]
    %v1177 = vld [vmem:[#allocation10 + $0x18] sm:$0xff]
    %v1178 = vld [vmem:[#allocation10 + $0x20] sm:$0xff]
    %v1179 = vld [vmem:[#allocation10 + $0x28] sm:$0xff]
    %v1180 = vld [vmem:[#allocation10 + $0x30] sm:$0xff]
    %v1181 = vld [vmem:[#allocation10 + $0x38] sm:$0xff]
    %v1182 = vld [vmem:[%s7] sm:$0x1]
    %v1184 = vlaneseq
    %v1185 = vshrl.u32 %v1184, 7
    %v1186 = vsub.s32 0, %v1185
    %v1187 = vrot.slane %v1182, %v1186
    %v1190 = vrot.slane %v1173, 6
    %vm1191 = vcmask 523264
    %v1192 = vsel %vm1191, %v1190, 0
    %1194 = vmatprep.subr.mxu0 0.0
    %1195 = vmatpush1.msra.mxu0 %v1174
    %1196 = vmatprep.subr.mxu0 0.0
    %1197 = vmatpush1.msra.mxu0 %v1175
    %1198 = vmatprep.subr.mxu0 0.0
    %1199 = vmatpush1.msra.mxu0 %v1176
    %1200 = vmatprep.subr.mxu0 0.0
    %1201 = vmatpush1.msra.mxu0 %v1177
    %1202 = vmatprep.subr.mxu0 0.0
    %1203 = vmatpush1.msra.mxu0 %v1178
    %1204 = vmatprep.subr.mxu0 0.0
    %1205 = vmatpush1.msra.mxu0 %v1179
    %1206 = vmatprep.subr.mxu0 0.0
    %1207 = vmatpush1.msra.mxu0 %v1180
    %1208 = vmatprep.subr.mxu0 0.0
    %1209 = vmatpush1.msra.mxu0 %v1181
    %1210 = vmatprep.subr.mxu0 0.0
    %1211 = vmatpush1.msra.mxu0 0.0
    %1212 = vmatprep.subr.mxu0 0.0
    %1213 = vmatpush1.msra.mxu0 0.0
    %1214 = vmatprep.subr.mxu0 0.0
    %1215 = vmatpush1.msra.mxu0 0.0
    %1216 = vmatprep.subr.mxu0 0.0
    %1217 = vmatpush1.msra.mxu0 0.0
    %1218 = vmatprep.subr.mxu0 0.0
    %1219 = vmatpush1.msra.mxu0 0.0
    %1220 = vmatprep.subr.mxu0 0.0
    %1221 = vmatpush1.msra.mxu0 0.0
    %1222 = vmatprep.subr.mxu0 0.0
    %1223 = vmatpush1.msra.mxu0 0.0
    %1224 = vmatprep.subr.mxu0 0.0
    %1225 = vmatpush1.msra.mxu0 0.0
    %1226 = vmatprep.subr.mxu0 0.0
    %1227 = vmatpush1.msra.mxu0 0.0
    %1228 = vmatprep.subr.mxu0 0.0
    %1229 = vmatpush1.msra.mxu0 0.0
    %1230 = vmatprep.subr.mxu0 0.0
    %1231 = vmatpush1.msra.mxu0 0.0
    %1232 = vmatprep.subr.mxu0 0.0
    %1233 = vmatpush1.msra.mxu0 0.0
    %1234 = vmatprep.subr.mxu0 0.0
    %1235 = vmatpush1.msra.mxu0 0.0
    %1236 = vmatprep.subr.mxu0 0.0
    %1237 = vmatpush1.msra.mxu0 0.0
    %1238 = vmatprep.subr.mxu0 0.0
    %1239 = vmatpush1.msra.mxu0 0.0
    %1240 = vmatprep.subr.mxu0 0.0
    %1241 = vmatpush1.msra.mxu0 0.0
    %1242 = vmatprep.subr.mxu0 0.0
    %1243 = vmatpush1.msra.mxu0 0.0
    %1244 = vmatprep.subr.mxu0 0.0
    %1245 = vmatpush1.msra.mxu0 0.0
    %1246 = vmatprep.subr.mxu0 0.0
    %1247 = vmatpush1.msra.mxu0 0.0
    %1248 = vmatprep.subr.mxu0 0.0
    %1249 = vmatpush1.msra.mxu0 0.0
    %1250 = vmatprep.subr.mxu0 0.0
    %1251 = vmatpush1.msra.mxu0 0.0
    %1252 = vmatprep.subr.mxu0 0.0
    %1253 = vmatpush1.msra.mxu0 0.0
    %1254 = vmatprep.subr.mxu0 0.0
    %1255 = vmatpush1.msra.mxu0 0.0
    %1256 = vmatprep.subr.mxu0 0.0
    %1257 = vmatpush1.msra.mxu0 0.0
    %1258 = vmatprep.mubr.f32.mxu0 0.0
    %1259 = vmatmul.mubr.f32.gmra.mrb[0].mxu0 %v1192
    %v1260 = vpop.f32.mrb[0].mxu0
    %v1261 = vadd.f32 %v1187, %v1260
    %v1262 = vpop.f32.mrb[0].mxu0
    %1263 = vdwg.mxu0
    %vm1264 = vcmask 1041408
    %v1265 = vsel %vm1264, %v1261, -inf
    %1266 = vmax.xlane.f32.xlu0 %v1265
    %v1267 = vpop.xlane.xlu0 %1266
    %v1268 = vsub.f32 %v1261, %v1267
    %v1269 = vmul.f32 %v1268, 1.442695
    %v1270 = vpow.pop %v1269
    %v1271 = vsel %vm1264, %v1270, 0.0
    %1272 = vadd.xlane.f32.xlu0 %v1271
    %v1273 = vpop.xlane.xlu0 %1272
    %v1274 = vrcp.pop %v1273
    %v1275 = vmul.f32 %v1270, %v1274
    %1276 = vst [vmem:[#allocation11] sm:$0x3] %v1275
    %v1277 = vlog2.pop %v1273
    %v1278 = vmul.f32 %v1277, 0.6931472
    %v1279 = vsub.f32 %v1268, %v1278
    %1280 = vst [vmem:[#allocation12] sm:$0x3] %v1279
    // Predicated region
    $region54: #{tpu_custom_call.1} parent=1 // pred_check
      _
    $region55: #{tpu_custom_call.1} parent=1 // pred_check_branch
      %1282 = sbr.rel (0) target = $region57
    $region56: #{tpu_custom_call.1} parent=1 // pred_region
      %s1284 = ssub.s32 32, 32
      %1285 = vsyncadd [#allocation4], %s1284
      %s1287 = sshll.u32 [#allocation11], 4
      %s1288 = int_to_ptr.vmem [resolvable:$true] %s1287
      %1290 = dma.vmem_to_hbm [thread:$0]  %s1288, 32, %s8, [#allocation4]
    $region57: #{tpu_custom_call.1} parent=1 // pred_fallthru
      _
    // Predicated region
    $region58: #{tpu_custom_call.1} parent=1 // pred_check
      _
    $region59: #{tpu_custom_call.1} parent=1 // pred_check_branch
      %1292 = sbr.rel (0) target = $region61
    $region60: #{tpu_custom_call.1} parent=1 // pred_region
      %s1294 = ssub.s32 32, 32
      %1295 = vsyncadd [#allocation13], %s1294
      %s1297 = sshll.u32 [#allocation12], 4
      %s1298 = int_to_ptr.vmem [resolvable:$true] %s1297
      %1300 = dma.vmem_to_hbm [thread:$0]  %s1298, 32, %s9, [#allocation13]
    $region61: #{tpu_custom_call.1} parent=1 // pred_fallthru
      _
    // Predicated region
    $region62: #{tpu_custom_call.1} parent=1 // pred_check
      _
    $region63: #{tpu_custom_call.1} parent=1 // pred_check_branch
      %1302 = sbr.rel (0) target = $region65
    $region64: #{tpu_custom_call.1} parent=1 // pred_region
      %1303 = dma.done [#allocation4], 32
    $region65: #{tpu_custom_call.1} parent=1 // pred_fallthru
      _
    // Predicated region
    $region66: #{tpu_custom_call.1} parent=1 // pred_check
      _
    $region67: #{tpu_custom_call.1} parent=1 // pred_check_branch
      %1305 = sbr.rel (0) target = $region69
    $region68: #{tpu_custom_call.1} parent=1 // pred_region
      %1306 = dma.done [#allocation13], 32
    $region69: #{tpu_custom_call.1} parent=1 // pred_fallthru
      _
    %1307 = vsyncpa [#allocation3], 1
    %1308 = vsyncpa [#allocation6], 1
    %1309 = vsyncpa [#allocation9], 1
    %1310 = vsyncpa [#allocation4], 1
    %1311 = vsyncpa [#allocation13], 1

</llo_original>
